<compile_context>
chip_gen: v7x
topology: tpu7x:2x2x1
jax: 0.10.0
libtpu: 0.0.40
codegen_flags: <defaults>
</compile_context>

<pallas_src>
import jax
import jax.numpy as jnp
from jax.experimental import pallas as pl
from jax.experimental.pallas import tpu as pltpu

MAX_TOKENS_PER_TILE = 8192   # upper bound on tokens handled per grid step
VMEM_BUDGET_BYTES = 40 << 20  # budget vs. smallest-VMEM generation (v7x: 64 MiB)


def _embedding_onehot_kernel(ids_ref, tab_ref, out_ref):
    """One grid step: gather rows*pack embedding rows via one-hot MXU matmuls."""
    ids = ids_ref[...]                     # (rows, pack) int32 -- this tile's token ids
    tab = tab_ref[...]                     # (v_pad, d_eff)     -- grid-invariant, VMEM resident
    rows, pack = ids.shape
    v_pad, d_eff = tab.shape

    iota_v = jax.lax.broadcasted_iota(jnp.int32, (rows, v_pad), 1)
    for j in range(pack):                  # static unroll; lane offsets are static
        # One-hot over the (padded) vocab for the tokens in lane-slot j.
        one_hot = (ids[:, j:j + 1] == iota_v).astype(tab.dtype)      # (rows, v_pad)
        # MXU gather: exactly one 1.0 per row -> exact row copy of the table.
        emb = jax.lax.dot_general(
            one_hot, tab, (((1,), (0,)), ((), ())),
            preferred_element_type=jnp.float32,
            precision=jax.lax.Precision.HIGHEST)                      # (rows, d_eff)
        out_ref[:, j * d_eff:(j + 1) * d_eff] = emb.astype(out_ref.dtype)


def _round_up(a, b):
    return ((a + b - 1) // b) * b


def embedding_lookup(x, weight, *, max_tokens_per_tile=MAX_TOKENS_PER_TILE):
    """Pallas equivalent of nn.Embedding(feature_dim, embedding_dim)(x) forward."""
    orig_shape = x.shape
    vocab, emb_d = weight.shape
    flat = x.reshape(-1).astype(jnp.int32)
    n = int(flat.shape[0])

    # Lane packing: `pack` tokens share one lane-dense (multiple-of-128) output row.
    if emb_d <= 128 and 128 % emb_d == 0:
        pack, d_eff = 128 // emb_d, emb_d
    else:
        pack, d_eff = 1, _round_up(emb_d, 128)   # pad D up to a lane-dense width
    out_width = pack * d_eff

    # Pad the vocab axis to a multiple of 128 (MXU K alignment, incl. v5e's 128-wide MXU).
    v_pad = max(128, _round_up(vocab, 128))
    tab = weight
    if d_eff != emb_d:
        tab = jnp.pad(tab, ((0, 0), (0, d_eff - emb_d)))
    if v_pad != vocab:
        tab = jnp.pad(tab, ((0, v_pad - vocab), (0, 0)))

    itemsize = jnp.dtype(weight.dtype).itemsize
    row_unit = 8 * pack   # token granularity of one (8, out_width) output tile

    tile_tokens = max(row_unit, min(_round_up(max_tokens_per_tile, row_unit),
                                    _round_up(n, row_unit)))

    def vmem_need(tok):
        rows = tok // pack
        table_b = 2 * v_pad * d_eff * itemsize        # grid-invariant block (double-buffered)
        out_b = 2 * rows * out_width * itemsize       # double-buffered output block
        ids_b = 2 * rows * 128 * 4                    # ids block (lane-padded)
        onehot_b = rows * v_pad * 4                   # transient one-hot
        return table_b + out_b + ids_b + onehot_b + (2 << 20)

    # Shrink tokens-per-tile until the working set fits the VMEM budget.
    while tile_tokens > row_unit and vmem_need(tile_tokens) > VMEM_BUDGET_BYTES:
        tile_tokens = max(row_unit, _round_up(tile_tokens // 2, row_unit))
    # TODO(synk): if the table alone exceeds the budget (huge vocab), fall back to a
    # per-tile manual DMA row gather from HBM instead of a resident-VMEM table.

    n_pad = _round_up(n, tile_tokens)
    flat = jnp.pad(flat, (0, n_pad - n))              # pad ids with 0; rows dropped below
    ids2d = flat.reshape(n_pad // pack, pack)
    rows_per_tile = tile_tokens // pack
    num_tiles = n_pad // tile_tokens

    out = pl.pallas_call(
        _embedding_onehot_kernel,
        out_shape=jax.ShapeDtypeStruct((n_pad // pack, out_width), weight.dtype),
        grid_spec=pltpu.PrefetchScalarGridSpec(
            num_scalar_prefetch=0,
            grid=(num_tiles,),
            in_specs=[
                pl.BlockSpec((rows_per_tile, pack), lambda g: (g, 0)),   # per-tile ids (VMEM)
                pl.BlockSpec((v_pad, d_eff), lambda g: (0, 0)),          # grid-invariant table
            ],
            out_specs=pl.BlockSpec((rows_per_tile, out_width), lambda g: (g, 0)),
        ),
        compiler_params=pltpu.CompilerParams(
            dimension_semantics=("parallel",),   # token tiles are independent (v7x: 2 TCs)
            vmem_limit_bytes=int(min(max(vmem_need(tile_tokens) + (4 << 20), 16 << 20),
                                     64 << 20)),
        ),
    )(ids2d, tab)

    # Undo lane packing / padding, drop padded tokens, restore leading dims.
    emb = out.reshape(n_pad, d_eff)[:n, :emb_d]
    return emb.reshape(*orig_shape, emb_d)


class EmbeddingLayer:
    """JAX/Pallas port of the PyTorch EmbeddingLayer module (forward pass)."""

    def __init__(self, feature_dim, embedding_dim, key):
        # self.embed.weight.data.normal_(0.0, 0.0001)
        self.weight = (
            jax.random.normal(key, (feature_dim, embedding_dim), jnp.float32) * 1e-4
        )

    def __call__(self, x):
        return embedding_lookup(x, self.weight)


if __name__ == "__main__":
    key = jax.random.PRNGKey(0)
    k_w, k_x = jax.random.split(key)

    feature_dim = 64      # vocabulary size
    embedding_dim = 32
    batch, seq = 2, 8

    layer = EmbeddingLayer(feature_dim, embedding_dim, k_w)
    x = jax.random.randint(k_x, (batch, seq), 0, feature_dim, dtype=jnp.int32)

    out = layer(x)
    out = jax.block_until_ready(out)

    # Reference check: plain gather in JAX.
    ref = layer.weight[x]
    assert out.shape == (batch, seq, embedding_dim), out.shape
    assert jnp.allclose(out, ref, rtol=1e-3, atol=1e-12), "mismatch vs reference gather"

    print("KERNEL_OK")
</pallas_src>

<mosaic_0001>
module attributes {stable_mosaic.version = 11 : i64} {
  func.func @_embedding_onehot_kernel(%arg0: i32, %arg1: memref<8x4xi32, #tpu.memory_space<vmem>>, %arg2: memref<128x32xf32, #tpu.memory_space<vmem>>, %arg3: memref<8x128xf32, #tpu.memory_space<vmem>>) attributes {dimension_semantics = [#tpu.dimension_semantics<parallel>], iteration_bounds = array<i64: 1>, scalar_prefetch = 0 : i64, scratch_operands = 0 : i64, tpu.core_type = #tpu.core_type<tc>, window_params = [{transform_indices = @transform_0, window_bounds = array<i64: 8, 4>}, {pipeline_mode = #tpu.pipeline_mode<synchronous>, transform_indices = @transform_1, window_bounds = array<i64: 128, 32>}, {transform_indices = @transform_2, window_bounds = array<i64: 8, 128>}]} {
    %c0 = arith.constant 0 : index
    %c0_0 = arith.constant 0 : index
    %0 = vector.load %arg1[%c0, %c0_0] : memref<8x4xi32, #tpu.memory_space<vmem>>, vector<8x4xi32>
    %c0_1 = arith.constant 0 : index
    %c0_2 = arith.constant 0 : index
    %1 = vector.load %arg2[%c0_1, %c0_2] : memref<128x32xf32, #tpu.memory_space<vmem>>, vector<128x32xf32>
    %2 = tpu.iota {dimensions = array<i32: 1>} : vector<8x128xi32>
    %3 = vector.extract_strided_slice %0 {offsets = [0, 0], sizes = [8, 1], strides = [1, 1]} : vector<8x4xi32> to vector<8x1xi32>
    %4 = vector.broadcast %3 : vector<8x1xi32> to vector<8x128xi32>
    %5 = arith.cmpi eq, %4, %2 : vector<8x128xi32>
    %6 = arith.extui %5 : vector<8x128xi1> to vector<8x128xi32>
    %7 = arith.sitofp %6 : vector<8x128xi32> to vector<8x128xf32>
    %cst = arith.constant dense<0.000000e+00> : vector<8x32xf32>
    %8 = tpu.matmul %7, %1, %cst {dimension_numbers = #tpu.dot_dimension_numbers<[1], [0], [0], [1], [0, 0, 1, 1], [], []>, precision = #tpu.contract_precision<fp32>} : vector<8x128xf32>, vector<128x32xf32>, vector<8x32xf32> -> vector<8x32xf32>
    %c0_3 = arith.constant 0 : index
    %c0_4 = arith.constant 0 : index
    %9 = vector.load %arg3[%c0_3, %c0_4] : memref<8x128xf32, #tpu.memory_space<vmem>>, vector<8x32xf32>
    tpu.vector_store %arg3[%c0_3, %c0_4], %8 {strides = array<i32>} : memref<8x128xf32, #tpu.memory_space<vmem>>, vector<8x32xf32>,
    %10 = vector.extract_strided_slice %0 {offsets = [0, 1], sizes = [8, 1], strides = [1, 1]} : vector<8x4xi32> to vector<8x1xi32>
    %11 = vector.broadcast %10 : vector<8x1xi32> to vector<8x128xi32>
    %12 = arith.cmpi eq, %11, %2 : vector<8x128xi32>
    %13 = arith.extui %12 : vector<8x128xi1> to vector<8x128xi32>
    %14 = arith.sitofp %13 : vector<8x128xi32> to vector<8x128xf32>
    %cst_5 = arith.constant dense<0.000000e+00> : vector<8x32xf32>
    %15 = tpu.matmul %14, %1, %cst_5 {dimension_numbers = #tpu.dot_dimension_numbers<[1], [0], [0], [1], [0, 0, 1, 1], [], []>, precision = #tpu.contract_precision<fp32>} : vector<8x128xf32>, vector<128x32xf32>, vector<8x32xf32> -> vector<8x32xf32>
    %c0_6 = arith.constant 0 : index
    %c32 = arith.constant 32 : index
    %16 = vector.load %arg3[%c0_6, %c32] : memref<8x128xf32, #tpu.memory_space<vmem>>, vector<8x32xf32>
    tpu.vector_store %arg3[%c0_6, %c32], %15 {strides = array<i32>} : memref<8x128xf32, #tpu.memory_space<vmem>>, vector<8x32xf32>,
    %17 = vector.extract_strided_slice %0 {offsets = [0, 2], sizes = [8, 1], strides = [1, 1]} : vector<8x4xi32> to vector<8x1xi32>
    %18 = vector.broadcast %17 : vector<8x1xi32> to vector<8x128xi32>
    %19 = arith.cmpi eq, %18, %2 : vector<8x128xi32>
    %20 = arith.extui %19 : vector<8x128xi1> to vector<8x128xi32>
    %21 = arith.sitofp %20 : vector<8x128xi32> to vector<8x128xf32>
    %cst_7 = arith.constant dense<0.000000e+00> : vector<8x32xf32>
    %22 = tpu.matmul %21, %1, %cst_7 {dimension_numbers = #tpu.dot_dimension_numbers<[1], [0], [0], [1], [0, 0, 1, 1], [], []>, precision = #tpu.contract_precision<fp32>} : vector<8x128xf32>, vector<128x32xf32>, vector<8x32xf32> -> vector<8x32xf32>
    %c0_8 = arith.constant 0 : index
    %c64 = arith.constant 64 : index
    %23 = vector.load %arg3[%c0_8, %c64] : memref<8x128xf32, #tpu.memory_space<vmem>>, vector<8x32xf32>
    tpu.vector_store %arg3[%c0_8, %c64], %22 {strides = array<i32>} : memref<8x128xf32, #tpu.memory_space<vmem>>, vector<8x32xf32>,
    %24 = vector.extract_strided_slice %0 {offsets = [0, 3], sizes = [8, 1], strides = [1, 1]} : vector<8x4xi32> to vector<8x1xi32>
    %25 = vector.broadcast %24 : vector<8x1xi32> to vector<8x128xi32>
    %26 = arith.cmpi eq, %25, %2 : vector<8x128xi32>
    %27 = arith.extui %26 : vector<8x128xi1> to vector<8x128xi32>
    %28 = arith.sitofp %27 : vector<8x128xi32> to vector<8x128xf32>
    %cst_9 = arith.constant dense<0.000000e+00> : vector<8x32xf32>
    %29 = tpu.matmul %28, %1, %cst_9 {dimension_numbers = #tpu.dot_dimension_numbers<[1], [0], [0], [1], [0, 0, 1, 1], [], []>, precision = #tpu.contract_precision<fp32>} : vector<8x128xf32>, vector<128x32xf32>, vector<8x32xf32> -> vector<8x32xf32>
    %c0_10 = arith.constant 0 : index
    %c96 = arith.constant 96 : index
    %30 = vector.load %arg3[%c0_10, %c96] : memref<8x128xf32, #tpu.memory_space<vmem>>, vector<8x32xf32>
    tpu.vector_store %arg3[%c0_10, %c96], %29 {strides = array<i32>} : memref<8x128xf32, #tpu.memory_space<vmem>>, vector<8x32xf32>,
    return
  }
  func.func @transform_0(%arg0: i32) -> (i32, i32) {
    %c0_i32 = arith.constant 0 : i32
    %c0_i32_0 = arith.constant 0 : i32
    return %arg0, %c0_i32 : i32, i32
  }
  func.func @transform_1(%arg0: i32) -> (i32, i32) {
    %c0_i32 = arith.constant 0 : i32
    %c0_i32_0 = arith.constant 0 : i32
    %c0_i32_1 = arith.constant 0 : i32
    return %c0_i32, %c0_i32_0 : i32, i32
  }
  func.func @transform_2(%arg0: i32) -> (i32, i32) {
    %c0_i32 = arith.constant 0 : i32
    %c0_i32_0 = arith.constant 0 : i32
    return %arg0, %c0_i32 : i32, i32
  }
}

</mosaic_0001>

<llo_original>
// kernel: tpu_custom_call.1
$region0: #{tpu_custom_call.1}
  #allocation0 [shape = 'u32[]', space=smem, size = 0x4, offset = 0x4, fixed_abs, tag = 'smem constant byte address 0x4 - core index']
  #allocation1 [shape = 'u32[144,128]{1,0:T(1,128)}', space=vmem, size = 0x12000, scoped, tag = 'internal scratch']
  %s0 = inlined_call_operand.vmem [shape: s32[8,4], index: 0, kind: input, shape index: {}]
  %s1 = inlined_call_operand.vmem [shape: f32[128,32], index: 1, kind: input, shape index: {}]
  %s2 = inlined_call_operand.hbm [shape: f32[8,128], index: 2, kind: output, shape index: {}]
  %s3 = sld [smem:[#allocation0]]
  $region18: #{tpu_custom_call.1} parent=0
    _
  %s5 = ssub.s32 1, %s3
  %s6 = scalar_select 0, %s5, %s3
  $region1: #{tpu_custom_call.1} parent=0
    #allocation2 [shape = 'u8[4096]{0}', space=vmem, size = 0x1000, scoped, tag = 'output window, operand 0, single buffered']
    #allocation3 [shape = 's32[1]{0}', space=sflag, size = 0x4, scoped, tag = 'scoped memory for tpu_custom_call.1']
    %7 = vsyncpa [#allocation3], 0
    // Predicated region
    $region2: #{tpu_custom_call.1} parent=1 // pred_check
      _
    $region3: #{tpu_custom_call.1} parent=1 // pred_check_branch
      %9 = sbr.rel (0) target = $region5
    $region4: #{tpu_custom_call.1} parent=1 // pred_region
      _
    $region5: #{tpu_custom_call.1} parent=1 // pred_fallthru
      _
    // Predicated region
    $region6: #{tpu_custom_call.1} parent=1 // pred_check
      _
    $region7: #{tpu_custom_call.1} parent=1 // pred_check_branch
      %11 = sbr.rel (0) target = $region9
    $region8: #{tpu_custom_call.1} parent=1 // pred_region
      _
    $region9: #{tpu_custom_call.1} parent=1 // pred_fallthru
      _
    %v12 = vld [vmem:[%s0] sm:$0xff]
    %v13 = vld [vmem:[%s1] sm:$0xff]
    %v14 = vld [vmem:[%s1 + $0x8] sm:$0xff]
    %v15 = vld [vmem:[%s1 + $0x10] sm:$0xff]
    %v16 = vld [vmem:[%s1 + $0x18] sm:$0xff]
    %v17 = vld [vmem:[%s1 + $0x20] sm:$0xff]
    %v18 = vld [vmem:[%s1 + $0x28] sm:$0xff]
    %v19 = vld [vmem:[%s1 + $0x30] sm:$0xff]
    %v20 = vld [vmem:[%s1 + $0x38] sm:$0xff]
    %v21 = vld [vmem:[%s1 + $0x40] sm:$0xff]
    %v22 = vld [vmem:[%s1 + $0x48] sm:$0xff]
    %v23 = vld [vmem:[%s1 + $0x50] sm:$0xff]
    %v24 = vld [vmem:[%s1 + $0x58] sm:$0xff]
    %v25 = vld [vmem:[%s1 + $0x60] sm:$0xff]
    %v26 = vld [vmem:[%s1 + $0x68] sm:$0xff]
    %v27 = vld [vmem:[%s1 + $0x70] sm:$0xff]
    %v28 = vld [vmem:[%s1 + $0x78] sm:$0xff]
    %v29 = vlaneseq
    %v30 = vand.u32 %v29, 127
    %31 = vset.pattern.permute.xlu0 0
    %32 = vperm.xlu0 %31, %v12
    %v33 = vpop.permute.xlu0 %32
    %vm34 = vcmp.eq.s32.totalorder %v33, %v30
    %v35 = vsel %vm34, 1, 0
    %v36 = vcvt.s32.f32 %v35
    %37 = vmatprep.subr.mxu0 0.0
    %v38 = vand.u32 %v13, 4294901760
    %39 = vmatpush1.msra.mxu0 %v38
    %40 = vmatprep.subr.mxu0 0.0
    %v41 = vand.u32 %v14, 4294901760
    %42 = vmatpush1.msra.mxu0 %v41
    %43 = vmatprep.subr.mxu0 0.0
    %v44 = vand.u32 %v15, 4294901760
    %45 = vmatpush1.msra.mxu0 %v44
    %46 = vmatprep.subr.mxu0 0.0
    %v47 = vand.u32 %v16, 4294901760
    %48 = vmatpush1.msra.mxu0 %v47
    %49 = vmatprep.subr.mxu0 0.0
    %v50 = vand.u32 %v17, 4294901760
    %51 = vmatpush1.msra.mxu0 %v50
    %52 = vmatprep.subr.mxu0 0.0
    %v53 = vand.u32 %v18, 4294901760
    %54 = vmatpush1.msra.mxu0 %v53
    %55 = vmatprep.subr.mxu0 0.0
    %v56 = vand.u32 %v19, 4294901760
    %57 = vmatpush1.msra.mxu0 %v56
    %58 = vmatprep.subr.mxu0 0.0
    %v59 = vand.u32 %v20, 4294901760
    %60 = vmatpush1.msra.mxu0 %v59
    %61 = vmatprep.subr.mxu0 0.0
    %v62 = vand.u32 %v21, 4294901760
    %63 = vmatpush1.msra.mxu0 %v62
    %64 = vmatprep.subr.mxu0 0.0
    %v65 = vand.u32 %v22, 4294901760
    %66 = vmatpush1.msra.mxu0 %v65
    %67 = vmatprep.subr.mxu0 0.0
    %v68 = vand.u32 %v23, 4294901760
    %69 = vmatpush1.msra.mxu0 %v68
    %70 = vmatprep.subr.mxu0 0.0
    %v71 = vand.u32 %v24, 4294901760
    %72 = vmatpush1.msra.mxu0 %v71
    %73 = vmatprep.subr.mxu0 0.0
    %v74 = vand.u32 %v25, 4294901760
    %75 = vmatpush1.msra.mxu0 %v74
    %76 = vmatprep.subr.mxu0 0.0
    %v77 = vand.u32 %v26, 4294901760
    %78 = vmatpush1.msra.mxu0 %v77
    %79 = vmatprep.subr.mxu0 0.0
    %v80 = vand.u32 %v27, 4294901760
    %81 = vmatpush1.msra.mxu0 %v80
    %82 = vmatprep.subr.mxu0 0.0
    %v83 = vand.u32 %v28, 4294901760
    %84 = vmatpush1.msra.mxu0 %v83
    %85 = vmatprep.subr.mxu0 0.0
    %86 = vmatpush1.msra.mxu0 0.0
    %87 = vmatprep.subr.mxu0 0.0
    %88 = vmatpush1.msra.mxu0 0.0
    %89 = vmatprep.subr.mxu0 0.0
    %90 = vmatpush1.msra.mxu0 0.0
    %91 = vmatprep.subr.mxu0 0.0
    %92 = vmatpush1.msra.mxu0 0.0
    %93 = vmatprep.subr.mxu0 0.0
    %94 = vmatpush1.msra.mxu0 0.0
    %95 = vmatprep.subr.mxu0 0.0
    %96 = vmatpush1.msra.mxu0 0.0
    %97 = vmatprep.subr.mxu0 0.0
    %98 = vmatpush1.msra.mxu0 0.0
    %99 = vmatprep.subr.mxu0 0.0
    %100 = vmatpush1.msra.mxu0 0.0
    %101 = vmatprep.subr.mxu0 0.0
    %102 = vmatpush1.msra.mxu0 0.0
    %103 = vmatprep.subr.mxu0 0.0
    %104 = vmatpush1.msra.mxu0 0.0
    %105 = vmatprep.subr.mxu0 0.0
    %106 = vmatpush1.msra.mxu0 0.0
    %107 = vmatprep.subr.mxu0 0.0
    %108 = vmatpush1.msra.mxu0 0.0
    %109 = vmatprep.subr.mxu0 0.0
    %110 = vmatpush1.msra.mxu0 0.0
    %111 = vmatprep.subr.mxu0 0.0
    %112 = vmatpush1.msra.mxu0 0.0
    %113 = vmatprep.subr.mxu0 0.0
    %114 = vmatpush1.msra.mxu0 0.0
    %115 = vmatprep.subr.mxu0 0.0
    %116 = vmatpush1.msra.mxu0 0.0
    %117 = vmatprep.mubr.f32.mxu0 0.0
    %v118 = vand.u32 %v36, 4294901760
    %v119 = vsub.f32 %v36, %v118
    %v120 = vand.u32 %v119, 4294901760
    %v121 = vsub.f32 %v119, %v120
    %v122 = vand.u32 %v121, 4294901760
    %123 = vmatmul.mubr.f32.gmra.mrb[0].mxu0 %v122
    %v124 = vpop.f32.mrb[0].mxu0
    %v125 = vadd.f32 0.0, %v124
    %v126 = vpop.f32.mrb[0].mxu0
    %127 = vdwg.mxu0
    %128 = vmatprep.subr.mxu0 0.0
    %v129 = vand.u32 %v13, 4294901760
    %v130 = vsub.f32 %v13, %v129
    %v131 = vand.u32 %v130, 4294901760
    %v132 = vsub.f32 %v130, %v131
    %v133 = vand.u32 %v132, 4294901760
    %134 = vmatpush1.msra.mxu0 %v133
    %135 = vmatprep.subr.mxu0 0.0
    %v136 = vand.u32 %v14, 4294901760
    %v137 = vsub.f32 %v14, %v136
    %v138 = vand.u32 %v137, 4294901760
    %v139 = vsub.f32 %v137, %v138
    %v140 = vand.u32 %v139, 4294901760
    %141 = vmatpush1.msra.mxu0 %v140
    %142 = vmatprep.subr.mxu0 0.0
    %v143 = vand.u32 %v15, 4294901760
    %v144 = vsub.f32 %v15, %v143
    %v145 = vand.u32 %v144, 4294901760
    %v146 = vsub.f32 %v144, %v145
    %v147 = vand.u32 %v146, 4294901760
    %148 = vmatpush1.msra.mxu0 %v147
    %149 = vmatprep.subr.mxu0 0.0
    %v150 = vand.u32 %v16, 4294901760
    %v151 = vsub.f32 %v16, %v150
    %v152 = vand.u32 %v151, 4294901760
    %v153 = vsub.f32 %v151, %v152
    %v154 = vand.u32 %v153, 4294901760
    %155 = vmatpush1.msra.mxu0 %v154
    %156 = vmatprep.subr.mxu0 0.0
    %v157 = vand.u32 %v17, 4294901760
    %v158 = vsub.f32 %v17, %v157
    %v159 = vand.u32 %v158, 4294901760
    %v160 = vsub.f32 %v158, %v159
    %v161 = vand.u32 %v160, 4294901760
    %162 = vmatpush1.msra.mxu0 %v161
    %163 = vmatprep.subr.mxu0 0.0
    %v164 = vand.u32 %v18, 4294901760
    %v165 = vsub.f32 %v18, %v164
    %v166 = vand.u32 %v165, 4294901760
    %v167 = vsub.f32 %v165, %v166
    %v168 = vand.u32 %v167, 4294901760
    %169 = vmatpush1.msra.mxu0 %v168
    %170 = vmatprep.subr.mxu0 0.0
    %v171 = vand.u32 %v19, 4294901760
    %v172 = vsub.f32 %v19, %v171
    %v173 = vand.u32 %v172, 4294901760
    %v174 = vsub.f32 %v172, %v173
    %v175 = vand.u32 %v174, 4294901760
    %176 = vmatpush1.msra.mxu0 %v175
    %177 = vmatprep.subr.mxu0 0.0
    %v178 = vand.u32 %v20, 4294901760
    %v179 = vsub.f32 %v20, %v178
    %v180 = vand.u32 %v179, 4294901760
    %v181 = vsub.f32 %v179, %v180
    %v182 = vand.u32 %v181, 4294901760
    %183 = vmatpush1.msra.mxu0 %v182
    %184 = vmatprep.subr.mxu0 0.0
    %v185 = vand.u32 %v21, 4294901760
    %v186 = vsub.f32 %v21, %v185
    %v187 = vand.u32 %v186, 4294901760
    %v188 = vsub.f32 %v186, %v187
    %v189 = vand.u32 %v188, 4294901760
    %190 = vmatpush1.msra.mxu0 %v189
    %191 = vmatprep.subr.mxu0 0.0
    %v192 = vand.u32 %v22, 4294901760
    %v193 = vsub.f32 %v22, %v192
    %v194 = vand.u32 %v193, 4294901760
    %v195 = vsub.f32 %v193, %v194
    %v196 = vand.u32 %v195, 4294901760
    %197 = vmatpush1.msra.mxu0 %v196
    %198 = vmatprep.subr.mxu0 0.0
    %v199 = vand.u32 %v23, 4294901760
    %v200 = vsub.f32 %v23, %v199
    %v201 = vand.u32 %v200, 4294901760
    %v202 = vsub.f32 %v200, %v201
    %v203 = vand.u32 %v202, 4294901760
    %204 = vmatpush1.msra.mxu0 %v203
    %205 = vmatprep.subr.mxu0 0.0
    %v206 = vand.u32 %v24, 4294901760
    %v207 = vsub.f32 %v24, %v206
    %v208 = vand.u32 %v207, 4294901760
    %v209 = vsub.f32 %v207, %v208
    %v210 = vand.u32 %v209, 4294901760
    %211 = vmatpush1.msra.mxu0 %v210
    %212 = vmatprep.subr.mxu0 0.0
    %v213 = vand.u32 %v25, 4294901760
    %v214 = vsub.f32 %v25, %v213
    %v215 = vand.u32 %v214, 4294901760
    %v216 = vsub.f32 %v214, %v215
    %v217 = vand.u32 %v216, 4294901760
    %218 = vmatpush1.msra.mxu0 %v217
    %219 = vmatprep.subr.mxu0 0.0
    %v220 = vand.u32 %v26, 4294901760
    %v221 = vsub.f32 %v26, %v220
    %v222 = vand.u32 %v221, 4294901760
    %v223 = vsub.f32 %v221, %v222
    %v224 = vand.u32 %v223, 4294901760
    %225 = vmatpush1.msra.mxu0 %v224
    %226 = vmatprep.subr.mxu0 0.0
    %v227 = vand.u32 %v27, 4294901760
    %v228 = vsub.f32 %v27, %v227
    %v229 = vand.u32 %v228, 4294901760
    %v230 = vsub.f32 %v228, %v229
    %v231 = vand.u32 %v230, 4294901760
    %232 = vmatpush1.msra.mxu0 %v231
    %233 = vmatprep.subr.mxu0 0.0
    %v234 = vand.u32 %v28, 4294901760
    %v235 = vsub.f32 %v28, %v234
    %v236 = vand.u32 %v235, 4294901760
    %v237 = vsub.f32 %v235, %v236
    %v238 = vand.u32 %v237, 4294901760
    %239 = vmatpush1.msra.mxu0 %v238
    %240 = vmatprep.subr.mxu0 0.0
    %241 = vmatpush1.msra.mxu0 0.0
    %242 = vmatprep.subr.mxu0 0.0
    %243 = vmatpush1.msra.mxu0 0.0
    %244 = vmatprep.subr.mxu0 0.0
    %245 = vmatpush1.msra.mxu0 0.0
    %246 = vmatprep.subr.mxu0 0.0
    %247 = vmatpush1.msra.mxu0 0.0
    %248 = vmatprep.subr.mxu0 0.0
    %249 = vmatpush1.msra.mxu0 0.0
    %250 = vmatprep.subr.mxu0 0.0
    %251 = vmatpush1.msra.mxu0 0.0
    %252 = vmatprep.subr.mxu0 0.0
    %253 = vmatpush1.msra.mxu0 0.0
    %254 = vmatprep.subr.mxu0 0.0
    %255 = vmatpush1.msra.mxu0 0.0
    %256 = vmatprep.subr.mxu0 0.0
    %257 = vmatpush1.msra.mxu0 0.0
    %258 = vmatprep.subr.mxu0 0.0
    %259 = vmatpush1.msra.mxu0 0.0
    %260 = vmatprep.subr.mxu0 0.0
    %261 = vmatpush1.msra.mxu0 0.0
    %262 = vmatprep.subr.mxu0 0.0
    %263 = vmatpush1.msra.mxu0 0.0
    %264 = vmatprep.subr.mxu0 0.0
    %265 = vmatpush1.msra.mxu0 0.0
    %266 = vmatprep.subr.mxu0 0.0
    %267 = vmatpush1.msra.mxu0 0.0
    %268 = vmatprep.subr.mxu0 0.0
    %269 = vmatpush1.msra.mxu0 0.0
    %270 = vmatprep.subr.mxu0 0.0
    %271 = vmatpush1.msra.mxu0 0.0
    %272 = vmatprep.mubr.f32.mxu0 0.0
    %v273 = vand.u32 %v36, 4294901760
    %274 = vmatmul.mubr.f32.gmra.mrb[0].mxu0 %v273
    %v275 = vpop.f32.mrb[0].mxu0
    %v276 = vadd.f32 %v125, %v275
    %v277 = vpop.f32.mrb[0].mxu0
    %278 = vdwg.mxu0
    %279 = vmatprep.subr.mxu0 0.0
    %v280 = vand.u32 %v13, 4294901760
    %v281 = vsub.f32 %v13, %v280
    %282 = vmatpush1.msra.mxu0 %v281
    %283 = vmatprep.subr.mxu0 0.0
    %v284 = vand.u32 %v14, 4294901760
    %v285 = vsub.f32 %v14, %v284
    %286 = vmatpush1.msra.mxu0 %v285
    %287 = vmatprep.subr.mxu0 0.0
    %v288 = vand.u32 %v15, 4294901760
    %v289 = vsub.f32 %v15, %v288
    %290 = vmatpush1.msra.mxu0 %v289
    %291 = vmatprep.subr.mxu0 0.0
    %v292 = vand.u32 %v16, 4294901760
    %v293 = vsub.f32 %v16, %v292
    %294 = vmatpush1.msra.mxu0 %v293
    %295 = vmatprep.subr.mxu0 0.0
    %v296 = vand.u32 %v17, 4294901760
    %v297 = vsub.f32 %v17, %v296
    %298 = vmatpush1.msra.mxu0 %v297
    %299 = vmatprep.subr.mxu0 0.0
    %v300 = vand.u32 %v18, 4294901760
    %v301 = vsub.f32 %v18, %v300
    %302 = vmatpush1.msra.mxu0 %v301
    %303 = vmatprep.subr.mxu0 0.0
    %v304 = vand.u32 %v19, 4294901760
    %v305 = vsub.f32 %v19, %v304
    %306 = vmatpush1.msra.mxu0 %v305
    %307 = vmatprep.subr.mxu0 0.0
    %v308 = vand.u32 %v20, 4294901760
    %v309 = vsub.f32 %v20, %v308
    %310 = vmatpush1.msra.mxu0 %v309
    %311 = vmatprep.subr.mxu0 0.0
    %v312 = vand.u32 %v21, 4294901760
    %v313 = vsub.f32 %v21, %v312
    %314 = vmatpush1.msra.mxu0 %v313
    %315 = vmatprep.subr.mxu0 0.0
    %v316 = vand.u32 %v22, 4294901760
    %v317 = vsub.f32 %v22, %v316
    %318 = vmatpush1.msra.mxu0 %v317
    %319 = vmatprep.subr.mxu0 0.0
    %v320 = vand.u32 %v23, 4294901760
    %v321 = vsub.f32 %v23, %v320
    %322 = vmatpush1.msra.mxu0 %v321
    %323 = vmatprep.subr.mxu0 0.0
    %v324 = vand.u32 %v24, 4294901760
    %v325 = vsub.f32 %v24, %v324
    %326 = vmatpush1.msra.mxu0 %v325
    %327 = vmatprep.subr.mxu0 0.0
    %v328 = vand.u32 %v25, 4294901760
    %v329 = vsub.f32 %v25, %v328
    %330 = vmatpush1.msra.mxu0 %v329
    %331 = vmatprep.subr.mxu0 0.0
    %v332 = vand.u32 %v26, 4294901760
    %v333 = vsub.f32 %v26, %v332
    %334 = vmatpush1.msra.mxu0 %v333
    %335 = vmatprep.subr.mxu0 0.0
    %v336 = vand.u32 %v27, 4294901760
    %v337 = vsub.f32 %v27, %v336
    %338 = vmatpush1.msra.mxu0 %v337
    %339 = vmatprep.subr.mxu0 0.0
    %v340 = vand.u32 %v28, 4294901760
    %v341 = vsub.f32 %v28, %v340
    %342 = vmatpush1.msra.mxu0 %v341
    %343 = vmatprep.subr.mxu0 0.0
    %344 = vmatpush1.msra.mxu0 0.0
    %345 = vmatprep.subr.mxu0 0.0
    %346 = vmatpush1.msra.mxu0 0.0
    %347 = vmatprep.subr.mxu0 0.0
    %348 = vmatpush1.msra.mxu0 0.0
    %349 = vmatprep.subr.mxu0 0.0
    %350 = vmatpush1.msra.mxu0 0.0
    %351 = vmatprep.subr.mxu0 0.0
    %352 = vmatpush1.msra.mxu0 0.0
    %353 = vmatprep.subr.mxu0 0.0
    %354 = vmatpush1.msra.mxu0 0.0
    %355 = vmatprep.subr.mxu0 0.0
    %356 = vmatpush1.msra.mxu0 0.0
    %357 = vmatprep.subr.mxu0 0.0
    %358 = vmatpush1.msra.mxu0 0.0
    %359 = vmatprep.subr.mxu0 0.0
    %360 = vmatpush1.msra.mxu0 0.0
    %361 = vmatprep.subr.mxu0 0.0
    %362 = vmatpush1.msra.mxu0 0.0
    %363 = vmatprep.subr.mxu0 0.0
    %364 = vmatpush1.msra.mxu0 0.0
    %365 = vmatprep.subr.mxu0 0.0
    %366 = vmatpush1.msra.mxu0 0.0
    %367 = vmatprep.subr.mxu0 0.0
    %368 = vmatpush1.msra.mxu0 0.0
    %369 = vmatprep.subr.mxu0 0.0
    %370 = vmatpush1.msra.mxu0 0.0
    %371 = vmatprep.subr.mxu0 0.0
    %372 = vmatpush1.msra.mxu0 0.0
    %373 = vmatprep.subr.mxu0 0.0
    %374 = vmatpush1.msra.mxu0 0.0
    %375 = vmatprep.mubr.f32.mxu0 0.0
    %v376 = vand.u32 %v36, 4294901760
    %v377 = vsub.f32 %v36, %v376
    %378 = vmatmul.mubr.f32.gmra.mrb[0].mxu0 %v377
    %v379 = vpop.f32.mrb[0].mxu0
    %v380 = vadd.f32 %v276, %v379
    %v381 = vpop.f32.mrb[0].mxu0
    %382 = vdwg.mxu0
    %383 = vmatprep.subr.mxu0 0.0
    %v384 = vand.u32 %v13, 4294901760
    %385 = vmatpush1.msra.mxu0 %v384
    %386 = vmatprep.subr.mxu0 0.0
    %v387 = vand.u32 %v14, 4294901760
    %388 = vmatpush1.msra.mxu0 %v387
    %389 = vmatprep.subr.mxu0 0.0
    %v390 = vand.u32 %v15, 4294901760
    %391 = vmatpush1.msra.mxu0 %v390
    %392 = vmatprep.subr.mxu0 0.0
    %v393 = vand.u32 %v16, 4294901760
    %394 = vmatpush1.msra.mxu0 %v393
    %395 = vmatprep.subr.mxu0 0.0
    %v396 = vand.u32 %v17, 4294901760
    %397 = vmatpush1.msra.mxu0 %v396
    %398 = vmatprep.subr.mxu0 0.0
    %v399 = vand.u32 %v18, 4294901760
    %400 = vmatpush1.msra.mxu0 %v399
    %401 = vmatprep.subr.mxu0 0.0
    %v402 = vand.u32 %v19, 4294901760
    %403 = vmatpush1.msra.mxu0 %v402
    %404 = vmatprep.subr.mxu0 0.0
    %v405 = vand.u32 %v20, 4294901760
    %406 = vmatpush1.msra.mxu0 %v405
    %407 = vmatprep.subr.mxu0 0.0
    %v408 = vand.u32 %v21, 4294901760
    %409 = vmatpush1.msra.mxu0 %v408
    %410 = vmatprep.subr.mxu0 0.0
    %v411 = vand.u32 %v22, 4294901760
    %412 = vmatpush1.msra.mxu0 %v411
    %413 = vmatprep.subr.mxu0 0.0
    %v414 = vand.u32 %v23, 4294901760
    %415 = vmatpush1.msra.mxu0 %v414
    %416 = vmatprep.subr.mxu0 0.0
    %v417 = vand.u32 %v24, 4294901760
    %418 = vmatpush1.msra.mxu0 %v417
    %419 = vmatprep.subr.mxu0 0.0
    %v420 = vand.u32 %v25, 4294901760
    %421 = vmatpush1.msra.mxu0 %v420
    %422 = vmatprep.subr.mxu0 0.0
    %v423 = vand.u32 %v26, 4294901760
    %424 = vmatpush1.msra.mxu0 %v423
    %425 = vmatprep.subr.mxu0 0.0
    %v426 = vand.u32 %v27, 4294901760
    %427 = vmatpush1.msra.mxu0 %v426
    %428 = vmatprep.subr.mxu0 0.0
    %v429 = vand.u32 %v28, 4294901760
    %430 = vmatpush1.msra.mxu0 %v429
    %431 = vmatprep.subr.mxu0 0.0
    %432 = vmatpush1.msra.mxu0 0.0
    %433 = vmatprep.subr.mxu0 0.0
    %434 = vmatpush1.msra.mxu0 0.0
    %435 = vmatprep.subr.mxu0 0.0
    %436 = vmatpush1.msra.mxu0 0.0
    %437 = vmatprep.subr.mxu0 0.0
    %438 = vmatpush1.msra.mxu0 0.0
    %439 = vmatprep.subr.mxu0 0.0
    %440 = vmatpush1.msra.mxu0 0.0
    %441 = vmatprep.subr.mxu0 0.0
    %442 = vmatpush1.msra.mxu0 0.0
    %443 = vmatprep.subr.mxu0 0.0
    %444 = vmatpush1.msra.mxu0 0.0
    %445 = vmatprep.subr.mxu0 0.0
    %446 = vmatpush1.msra.mxu0 0.0
    %447 = vmatprep.subr.mxu0 0.0
    %448 = vmatpush1.msra.mxu0 0.0
    %449 = vmatprep.subr.mxu0 0.0
    %450 = vmatpush1.msra.mxu0 0.0
    %451 = vmatprep.subr.mxu0 0.0
    %452 = vmatpush1.msra.mxu0 0.0
    %453 = vmatprep.subr.mxu0 0.0
    %454 = vmatpush1.msra.mxu0 0.0
    %455 = vmatprep.subr.mxu0 0.0
    %456 = vmatpush1.msra.mxu0 0.0
    %457 = vmatprep.subr.mxu0 0.0
    %458 = vmatpush1.msra.mxu0 0.0
    %459 = vmatprep.subr.mxu0 0.0
    %460 = vmatpush1.msra.mxu0 0.0
    %461 = vmatprep.subr.mxu0 0.0
    %462 = vmatpush1.msra.mxu0 0.0
    %463 = vmatprep.mubr.f32.mxu0 0.0
    %v464 = vand.u32 %v36, 4294901760
    %v465 = vsub.f32 %v36, %v464
    %v466 = vand.u32 %v465, 4294901760
    %467 = vmatmul.mubr.f32.gmra.mrb[0].mxu0 %v466
    %v468 = vpop.f32.mrb[0].mxu0
    %v469 = vadd.f32 %v380, %v468
    %v470 = vpop.f32.mrb[0].mxu0
    %471 = vdwg.mxu0
    %472 = vmatprep.subr.mxu0 0.0
    %v473 = vand.u32 %v13, 4294901760
    %v474 = vsub.f32 %v13, %v473
    %v475 = vand.u32 %v474, 4294901760
    %476 = vmatpush1.msra.mxu0 %v475
    %477 = vmatprep.subr.mxu0 0.0
    %v478 = vand.u32 %v14, 4294901760
    %v479 = vsub.f32 %v14, %v478
    %v480 = vand.u32 %v479, 4294901760
    %481 = vmatpush1.msra.mxu0 %v480
    %482 = vmatprep.subr.mxu0 0.0
    %v483 = vand.u32 %v15, 4294901760
    %v484 = vsub.f32 %v15, %v483
    %v485 = vand.u32 %v484, 4294901760
    %486 = vmatpush1.msra.mxu0 %v485
    %487 = vmatprep.subr.mxu0 0.0
    %v488 = vand.u32 %v16, 4294901760
    %v489 = vsub.f32 %v16, %v488
    %v490 = vand.u32 %v489, 4294901760
    %491 = vmatpush1.msra.mxu0 %v490
    %492 = vmatprep.subr.mxu0 0.0
    %v493 = vand.u32 %v17, 4294901760
    %v494 = vsub.f32 %v17, %v493
    %v495 = vand.u32 %v494, 4294901760
    %496 = vmatpush1.msra.mxu0 %v495
    %497 = vmatprep.subr.mxu0 0.0
    %v498 = vand.u32 %v18, 4294901760
    %v499 = vsub.f32 %v18, %v498
    %v500 = vand.u32 %v499, 4294901760
    %501 = vmatpush1.msra.mxu0 %v500
    %502 = vmatprep.subr.mxu0 0.0
    %v503 = vand.u32 %v19, 4294901760
    %v504 = vsub.f32 %v19, %v503
    %v505 = vand.u32 %v504, 4294901760
    %506 = vmatpush1.msra.mxu0 %v505
    %507 = vmatprep.subr.mxu0 0.0
    %v508 = vand.u32 %v20, 4294901760
    %v509 = vsub.f32 %v20, %v508
    %v510 = vand.u32 %v509, 4294901760
    %511 = vmatpush1.msra.mxu0 %v510
    %512 = vmatprep.subr.mxu0 0.0
    %v513 = vand.u32 %v21, 4294901760
    %v514 = vsub.f32 %v21, %v513
    %v515 = vand.u32 %v514, 4294901760
    %516 = vmatpush1.msra.mxu0 %v515
    %517 = vmatprep.subr.mxu0 0.0
    %v518 = vand.u32 %v22, 4294901760
    %v519 = vsub.f32 %v22, %v518
    %v520 = vand.u32 %v519, 4294901760
    %521 = vmatpush1.msra.mxu0 %v520
    %522 = vmatprep.subr.mxu0 0.0
    %v523 = vand.u32 %v23, 4294901760
    %v524 = vsub.f32 %v23, %v523
    %v525 = vand.u32 %v524, 4294901760
    %526 = vmatpush1.msra.mxu0 %v525
    %527 = vmatprep.subr.mxu0 0.0
    %v528 = vand.u32 %v24, 4294901760
    %v529 = vsub.f32 %v24, %v528
    %v530 = vand.u32 %v529, 4294901760
    %531 = vmatpush1.msra.mxu0 %v530
    %532 = vmatprep.subr.mxu0 0.0
    %v533 = vand.u32 %v25, 4294901760
    %v534 = vsub.f32 %v25, %v533
    %v535 = vand.u32 %v534, 4294901760
    %536 = vmatpush1.msra.mxu0 %v535
    %537 = vmatprep.subr.mxu0 0.0
    %v538 = vand.u32 %v26, 4294901760
    %v539 = vsub.f32 %v26, %v538
    %v540 = vand.u32 %v539, 4294901760
    %541 = vmatpush1.msra.mxu0 %v540
    %542 = vmatprep.subr.mxu0 0.0
    %v543 = vand.u32 %v27, 4294901760
    %v544 = vsub.f32 %v27, %v543
    %v545 = vand.u32 %v544, 4294901760
    %546 = vmatpush1.msra.mxu0 %v545
    %547 = vmatprep.subr.mxu0 0.0
    %v548 = vand.u32 %v28, 4294901760
    %v549 = vsub.f32 %v28, %v548
    %v550 = vand.u32 %v549, 4294901760
    %551 = vmatpush1.msra.mxu0 %v550
    %552 = vmatprep.subr.mxu0 0.0
    %553 = vmatpush1.msra.mxu0 0.0
    %554 = vmatprep.subr.mxu0 0.0
    %555 = vmatpush1.msra.mxu0 0.0
    %556 = vmatprep.subr.mxu0 0.0
    %557 = vmatpush1.msra.mxu0 0.0
    %558 = vmatprep.subr.mxu0 0.0
    %559 = vmatpush1.msra.mxu0 0.0
    %560 = vmatprep.subr.mxu0 0.0
    %561 = vmatpush1.msra.mxu0 0.0
    %562 = vmatprep.subr.mxu0 0.0
    %563 = vmatpush1.msra.mxu0 0.0
    %564 = vmatprep.subr.mxu0 0.0
    %565 = vmatpush1.msra.mxu0 0.0
    %566 = vmatprep.subr.mxu0 0.0
    %567 = vmatpush1.msra.mxu0 0.0
    %568 = vmatprep.subr.mxu0 0.0
    %569 = vmatpush1.msra.mxu0 0.0
    %570 = vmatprep.subr.mxu0 0.0
    %571 = vmatpush1.msra.mxu0 0.0
    %572 = vmatprep.subr.mxu0 0.0
    %573 = vmatpush1.msra.mxu0 0.0
    %574 = vmatprep.subr.mxu0 0.0
    %575 = vmatpush1.msra.mxu0 0.0
    %576 = vmatprep.subr.mxu0 0.0
    %577 = vmatpush1.msra.mxu0 0.0
    %578 = vmatprep.subr.mxu0 0.0
    %579 = vmatpush1.msra.mxu0 0.0
    %580 = vmatprep.subr.mxu0 0.0
    %581 = vmatpush1.msra.mxu0 0.0
    %582 = vmatprep.subr.mxu0 0.0
    %583 = vmatpush1.msra.mxu0 0.0
    %584 = vmatprep.mubr.f32.mxu0 0.0
    %v585 = vand.u32 %v36, 4294901760
    %586 = vmatmul.mubr.f32.gmra.mrb[0].mxu0 %v585
    %v587 = vpop.f32.mrb[0].mxu0
    %v588 = vadd.f32 %v469, %v587
    %v589 = vpop.f32.mrb[0].mxu0
    %590 = vdwg.mxu0
    %591 = vmatprep.subr.mxu0 0.0
    %v592 = vand.u32 %v13, 4294901760
    %593 = vmatpush1.msra.mxu0 %v592
    %594 = vmatprep.subr.mxu0 0.0
    %v595 = vand.u32 %v14, 4294901760
    %596 = vmatpush1.msra.mxu0 %v595
    %597 = vmatprep.subr.mxu0 0.0
    %v598 = vand.u32 %v15, 4294901760
    %599 = vmatpush1.msra.mxu0 %v598
    %600 = vmatprep.subr.mxu0 0.0
    %v601 = vand.u32 %v16, 4294901760
    %602 = vmatpush1.msra.mxu0 %v601
    %603 = vmatprep.subr.mxu0 0.0
    %v604 = vand.u32 %v17, 4294901760
    %605 = vmatpush1.msra.mxu0 %v604
    %606 = vmatprep.subr.mxu0 0.0
    %v607 = vand.u32 %v18, 4294901760
    %608 = vmatpush1.msra.mxu0 %v607
    %609 = vmatprep.subr.mxu0 0.0
    %v610 = vand.u32 %v19, 4294901760
    %611 = vmatpush1.msra.mxu0 %v610
    %612 = vmatprep.subr.mxu0 0.0
    %v613 = vand.u32 %v20, 4294901760
    %614 = vmatpush1.msra.mxu0 %v613
    %615 = vmatprep.subr.mxu0 0.0
    %v616 = vand.u32 %v21, 4294901760
    %617 = vmatpush1.msra.mxu0 %v616
    %618 = vmatprep.subr.mxu0 0.0
    %v619 = vand.u32 %v22, 4294901760
    %620 = vmatpush1.msra.mxu0 %v619
    %621 = vmatprep.subr.mxu0 0.0
    %v622 = vand.u32 %v23, 4294901760
    %623 = vmatpush1.msra.mxu0 %v622
    %624 = vmatprep.subr.mxu0 0.0
    %v625 = vand.u32 %v24, 4294901760
    %626 = vmatpush1.msra.mxu0 %v625
    %627 = vmatprep.subr.mxu0 0.0
    %v628 = vand.u32 %v25, 4294901760
    %629 = vmatpush1.msra.mxu0 %v628
    %630 = vmatprep.subr.mxu0 0.0
    %v631 = vand.u32 %v26, 4294901760
    %632 = vmatpush1.msra.mxu0 %v631
    %633 = vmatprep.subr.mxu0 0.0
    %v634 = vand.u32 %v27, 4294901760
    %635 = vmatpush1.msra.mxu0 %v634
    %636 = vmatprep.subr.mxu0 0.0
    %v637 = vand.u32 %v28, 4294901760
    %638 = vmatpush1.msra.mxu0 %v637
    %639 = vmatprep.subr.mxu0 0.0
    %640 = vmatpush1.msra.mxu0 0.0
    %641 = vmatprep.subr.mxu0 0.0
    %642 = vmatpush1.msra.mxu0 0.0
    %643 = vmatprep.subr.mxu0 0.0
    %644 = vmatpush1.msra.mxu0 0.0
    %645 = vmatprep.subr.mxu0 0.0
    %646 = vmatpush1.msra.mxu0 0.0
    %647 = vmatprep.subr.mxu0 0.0
    %648 = vmatpush1.msra.mxu0 0.0
    %649 = vmatprep.subr.mxu0 0.0
    %650 = vmatpush1.msra.mxu0 0.0
    %651 = vmatprep.subr.mxu0 0.0
    %652 = vmatpush1.msra.mxu0 0.0
    %653 = vmatprep.subr.mxu0 0.0
    %654 = vmatpush1.msra.mxu0 0.0
    %655 = vmatprep.subr.mxu0 0.0
    %656 = vmatpush1.msra.mxu0 0.0
    %657 = vmatprep.subr.mxu0 0.0
    %658 = vmatpush1.msra.mxu0 0.0
    %659 = vmatprep.subr.mxu0 0.0
    %660 = vmatpush1.msra.mxu0 0.0
    %661 = vmatprep.subr.mxu0 0.0
    %662 = vmatpush1.msra.mxu0 0.0
    %663 = vmatprep.subr.mxu0 0.0
    %664 = vmatpush1.msra.mxu0 0.0
    %665 = vmatprep.subr.mxu0 0.0
    %666 = vmatpush1.msra.mxu0 0.0
    %667 = vmatprep.subr.mxu0 0.0
    %668 = vmatpush1.msra.mxu0 0.0
    %669 = vmatprep.subr.mxu0 0.0
    %670 = vmatpush1.msra.mxu0 0.0
    %671 = vmatprep.mubr.f32.mxu0 0.0
    %v672 = vand.u32 %v36, 4294901760
    %673 = vmatmul.mubr.f32.gmra.mrb[0].mxu0 %v672
    %v674 = vpop.f32.mrb[0].mxu0
    %v675 = vadd.f32 %v588, %v674
    %v676 = vpop.f32.mrb[0].mxu0
    %677 = vdwg.mxu0
    %vm678 = vcmask 261120
    %679 = vst.msk [vmem:[#allocation2] sm:$0xff] %vm678, %v675
    %680 = vset.pattern.permute.xlu0 1
    %681 = vperm.xlu0 %680, %v12
    %v682 = vpop.permute.xlu0 %681
    %vm683 = vcmp.eq.s32.totalorder %v682, %v30
    %v684 = vsel %vm683, 1, 0
    %v685 = vcvt.s32.f32 %v684
    %686 = vmatprep.subr.mxu0 0.0
    %v687 = vand.u32 %v13, 4294901760
    %688 = vmatpush1.msra.mxu0 %v687
    %689 = vmatprep.subr.mxu0 0.0
    %v690 = vand.u32 %v14, 4294901760
    %691 = vmatpush1.msra.mxu0 %v690
    %692 = vmatprep.subr.mxu0 0.0
    %v693 = vand.u32 %v15, 4294901760
    %694 = vmatpush1.msra.mxu0 %v693
    %695 = vmatprep.subr.mxu0 0.0
    %v696 = vand.u32 %v16, 4294901760
    %697 = vmatpush1.msra.mxu0 %v696
    %698 = vmatprep.subr.mxu0 0.0
    %v699 = vand.u32 %v17, 4294901760
    %700 = vmatpush1.msra.mxu0 %v699
    %701 = vmatprep.subr.mxu0 0.0
    %v702 = vand.u32 %v18, 4294901760
    %703 = vmatpush1.msra.mxu0 %v702
    %704 = vmatprep.subr.mxu0 0.0
    %v705 = vand.u32 %v19, 4294901760
    %706 = vmatpush1.msra.mxu0 %v705
    %707 = vmatprep.subr.mxu0 0.0
    %v708 = vand.u32 %v20, 4294901760
    %709 = vmatpush1.msra.mxu0 %v708
    %710 = vmatprep.subr.mxu0 0.0
    %v711 = vand.u32 %v21, 4294901760
    %712 = vmatpush1.msra.mxu0 %v711
    %713 = vmatprep.subr.mxu0 0.0
    %v714 = vand.u32 %v22, 4294901760
    %715 = vmatpush1.msra.mxu0 %v714
    %716 = vmatprep.subr.mxu0 0.0
    %v717 = vand.u32 %v23, 4294901760
    %718 = vmatpush1.msra.mxu0 %v717
    %719 = vmatprep.subr.mxu0 0.0
    %v720 = vand.u32 %v24, 4294901760
    %721 = vmatpush1.msra.mxu0 %v720
    %722 = vmatprep.subr.mxu0 0.0
    %v723 = vand.u32 %v25, 4294901760
    %724 = vmatpush1.msra.mxu0 %v723
    %725 = vmatprep.subr.mxu0 0.0
    %v726 = vand.u32 %v26, 4294901760
    %727 = vmatpush1.msra.mxu0 %v726
    %728 = vmatprep.subr.mxu0 0.0
    %v729 = vand.u32 %v27, 4294901760
    %730 = vmatpush1.msra.mxu0 %v729
    %731 = vmatprep.subr.mxu0 0.0
    %v732 = vand.u32 %v28, 4294901760
    %733 = vmatpush1.msra.mxu0 %v732
    %734 = vmatprep.subr.mxu0 0.0
    %735 = vmatpush1.msra.mxu0 0.0
    %736 = vmatprep.subr.mxu0 0.0
    %737 = vmatpush1.msra.mxu0 0.0
    %738 = vmatprep.subr.mxu0 0.0
    %739 = vmatpush1.msra.mxu0 0.0
    %740 = vmatprep.subr.mxu0 0.0
    %741 = vmatpush1.msra.mxu0 0.0
    %742 = vmatprep.subr.mxu0 0.0
    %743 = vmatpush1.msra.mxu0 0.0
    %744 = vmatprep.subr.mxu0 0.0
    %745 = vmatpush1.msra.mxu0 0.0
    %746 = vmatprep.subr.mxu0 0.0
    %747 = vmatpush1.msra.mxu0 0.0
    %748 = vmatprep.subr.mxu0 0.0
    %749 = vmatpush1.msra.mxu0 0.0
    %750 = vmatprep.subr.mxu0 0.0
    %751 = vmatpush1.msra.mxu0 0.0
    %752 = vmatprep.subr.mxu0 0.0
    %753 = vmatpush1.msra.mxu0 0.0
    %754 = vmatprep.subr.mxu0 0.0
    %755 = vmatpush1.msra.mxu0 0.0
    %756 = vmatprep.subr.mxu0 0.0
    %757 = vmatpush1.msra.mxu0 0.0
    %758 = vmatprep.subr.mxu0 0.0
    %759 = vmatpush1.msra.mxu0 0.0
    %760 = vmatprep.subr.mxu0 0.0
    %761 = vmatpush1.msra.mxu0 0.0
    %762 = vmatprep.subr.mxu0 0.0
    %763 = vmatpush1.msra.mxu0 0.0
    %764 = vmatprep.subr.mxu0 0.0
    %765 = vmatpush1.msra.mxu0 0.0
    %766 = vmatprep.mubr.f32.mxu0 0.0
    %v767 = vand.u32 %v685, 4294901760
    %v768 = vsub.f32 %v685, %v767
    %v769 = vand.u32 %v768, 4294901760
    %v770 = vsub.f32 %v768, %v769
    %v771 = vand.u32 %v770, 4294901760
    %772 = vmatmul.mubr.f32.gmra.mrb[0].mxu0 %v771
    %v773 = vpop.f32.mrb[0].mxu0
    %v774 = vadd.f32 0.0, %v773
    %v775 = vpop.f32.mrb[0].mxu0
    %776 = vdwg.mxu0
    %777 = vmatprep.subr.mxu0 0.0
    %v778 = vand.u32 %v13, 4294901760
    %v779 = vsub.f32 %v13, %v778
    %v780 = vand.u32 %v779, 4294901760
    %v781 = vsub.f32 %v779, %v780
    %v782 = vand.u32 %v781, 4294901760
    %783 = vmatpush1.msra.mxu0 %v782
    %784 = vmatprep.subr.mxu0 0.0
    %v785 = vand.u32 %v14, 4294901760
    %v786 = vsub.f32 %v14, %v785
    %v787 = vand.u32 %v786, 4294901760
    %v788 = vsub.f32 %v786, %v787
    %v789 = vand.u32 %v788, 4294901760
    %790 = vmatpush1.msra.mxu0 %v789
    %791 = vmatprep.subr.mxu0 0.0
    %v792 = vand.u32 %v15, 4294901760
    %v793 = vsub.f32 %v15, %v792
    %v794 = vand.u32 %v793, 4294901760
    %v795 = vsub.f32 %v793, %v794
    %v796 = vand.u32 %v795, 4294901760
    %797 = vmatpush1.msra.mxu0 %v796
    %798 = vmatprep.subr.mxu0 0.0
    %v799 = vand.u32 %v16, 4294901760
    %v800 = vsub.f32 %v16, %v799
    %v801 = vand.u32 %v800, 4294901760
    %v802 = vsub.f32 %v800, %v801
    %v803 = vand.u32 %v802, 4294901760
    %804 = vmatpush1.msra.mxu0 %v803
    %805 = vmatprep.subr.mxu0 0.0
    %v806 = vand.u32 %v17, 4294901760
    %v807 = vsub.f32 %v17, %v806
    %v808 = vand.u32 %v807, 4294901760
    %v809 = vsub.f32 %v807, %v808
    %v810 = vand.u32 %v809, 4294901760
    %811 = vmatpush1.msra.mxu0 %v810
    %812 = vmatprep.subr.mxu0 0.0
    %v813 = vand.u32 %v18, 4294901760
    %v814 = vsub.f32 %v18, %v813
    %v815 = vand.u32 %v814, 4294901760
    %v816 = vsub.f32 %v814, %v815
    %v817 = vand.u32 %v816, 4294901760
    %818 = vmatpush1.msra.mxu0 %v817
    %819 = vmatprep.subr.mxu0 0.0
    %v820 = vand.u32 %v19, 4294901760
    %v821 = vsub.f32 %v19, %v820
    %v822 = vand.u32 %v821, 4294901760
    %v823 = vsub.f32 %v821, %v822
    %v824 = vand.u32 %v823, 4294901760
    %825 = vmatpush1.msra.mxu0 %v824
    %826 = vmatprep.subr.mxu0 0.0
    %v827 = vand.u32 %v20, 4294901760
    %v828 = vsub.f32 %v20, %v827
    %v829 = vand.u32 %v828, 4294901760
    %v830 = vsub.f32 %v828, %v829
    %v831 = vand.u32 %v830, 4294901760
    %832 = vmatpush1.msra.mxu0 %v831
    %833 = vmatprep.subr.mxu0 0.0
    %v834 = vand.u32 %v21, 4294901760
    %v835 = vsub.f32 %v21, %v834
    %v836 = vand.u32 %v835, 4294901760
    %v837 = vsub.f32 %v835, %v836
    %v838 = vand.u32 %v837, 4294901760
    %839 = vmatpush1.msra.mxu0 %v838
    %840 = vmatprep.subr.mxu0 0.0
    %v841 = vand.u32 %v22, 4294901760
    %v842 = vsub.f32 %v22, %v841
    %v843 = vand.u32 %v842, 4294901760
    %v844 = vsub.f32 %v842, %v843
    %v845 = vand.u32 %v844, 4294901760
    %846 = vmatpush1.msra.mxu0 %v845
    %847 = vmatprep.subr.mxu0 0.0
    %v848 = vand.u32 %v23, 4294901760
    %v849 = vsub.f32 %v23, %v848
    %v850 = vand.u32 %v849, 4294901760
    %v851 = vsub.f32 %v849, %v850
    %v852 = vand.u32 %v851, 4294901760
    %853 = vmatpush1.msra.mxu0 %v852
    %854 = vmatprep.subr.mxu0 0.0
    %v855 = vand.u32 %v24, 4294901760
    %v856 = vsub.f32 %v24, %v855
    %v857 = vand.u32 %v856, 4294901760
    %v858 = vsub.f32 %v856, %v857
    %v859 = vand.u32 %v858, 4294901760
    %860 = vmatpush1.msra.mxu0 %v859
    %861 = vmatprep.subr.mxu0 0.0
    %v862 = vand.u32 %v25, 4294901760
    %v863 = vsub.f32 %v25, %v862
    %v864 = vand.u32 %v863, 4294901760
    %v865 = vsub.f32 %v863, %v864
    %v866 = vand.u32 %v865, 4294901760
    %867 = vmatpush1.msra.mxu0 %v866
    %868 = vmatprep.subr.mxu0 0.0
    %v869 = vand.u32 %v26, 4294901760
    %v870 = vsub.f32 %v26, %v869
    %v871 = vand.u32 %v870, 4294901760
    %v872 = vsub.f32 %v870, %v871
    %v873 = vand.u32 %v872, 4294901760
    %874 = vmatpush1.msra.mxu0 %v873
    %875 = vmatprep.subr.mxu0 0.0
    %v876 = vand.u32 %v27, 4294901760
    %v877 = vsub.f32 %v27, %v876
    %v878 = vand.u32 %v877, 4294901760
    %v879 = vsub.f32 %v877, %v878
    %v880 = vand.u32 %v879, 4294901760
    %881 = vmatpush1.msra.mxu0 %v880
    %882 = vmatprep.subr.mxu0 0.0
    %v883 = vand.u32 %v28, 4294901760
    %v884 = vsub.f32 %v28, %v883
    %v885 = vand.u32 %v884, 4294901760
    %v886 = vsub.f32 %v884, %v885
    %v887 = vand.u32 %v886, 4294901760
    %888 = vmatpush1.msra.mxu0 %v887
    %889 = vmatprep.subr.mxu0 0.0
    %890 = vmatpush1.msra.mxu0 0.0
    %891 = vmatprep.subr.mxu0 0.0
    %892 = vmatpush1.msra.mxu0 0.0
    %893 = vmatprep.subr.mxu0 0.0
    %894 = vmatpush1.msra.mxu0 0.0
    %895 = vmatprep.subr.mxu0 0.0
    %896 = vmatpush1.msra.mxu0 0.0
    %897 = vmatprep.subr.mxu0 0.0
    %898 = vmatpush1.msra.mxu0 0.0
    %899 = vmatprep.subr.mxu0 0.0
    %900 = vmatpush1.msra.mxu0 0.0
    %901 = vmatprep.subr.mxu0 0.0
    %902 = vmatpush1.msra.mxu0 0.0
    %903 = vmatprep.subr.mxu0 0.0
    %904 = vmatpush1.msra.mxu0 0.0
    %905 = vmatprep.subr.mxu0 0.0
    %906 = vmatpush1.msra.mxu0 0.0
    %907 = vmatprep.subr.mxu0 0.0
    %908 = vmatpush1.msra.mxu0 0.0
    %909 = vmatprep.subr.mxu0 0.0
    %910 = vmatpush1.msra.mxu0 0.0
    %911 = vmatprep.subr.mxu0 0.0
    %912 = vmatpush1.msra.mxu0 0.0
    %913 = vmatprep.subr.mxu0 0.0
    %914 = vmatpush1.msra.mxu0 0.0
    %915 = vmatprep.subr.mxu0 0.0
    %916 = vmatpush1.msra.mxu0 0.0
    %917 = vmatprep.subr.mxu0 0.0
    %918 = vmatpush1.msra.mxu0 0.0
    %919 = vmatprep.subr.mxu0 0.0
    %920 = vmatpush1.msra.mxu0 0.0
    %921 = vmatprep.mubr.f32.mxu0 0.0
    %v922 = vand.u32 %v685, 4294901760
    %923 = vmatmul.mubr.f32.gmra.mrb[0].mxu0 %v922
    %v924 = vpop.f32.mrb[0].mxu0
    %v925 = vadd.f32 %v774, %v924
    %v926 = vpop.f32.mrb[0].mxu0
    %927 = vdwg.mxu0
    %928 = vmatprep.subr.mxu0 0.0
    %v929 = vand.u32 %v13, 4294901760
    %v930 = vsub.f32 %v13, %v929
    %931 = vmatpush1.msra.mxu0 %v930
    %932 = vmatprep.subr.mxu0 0.0
    %v933 = vand.u32 %v14, 4294901760
    %v934 = vsub.f32 %v14, %v933
    %935 = vmatpush1.msra.mxu0 %v934
    %936 = vmatprep.subr.mxu0 0.0
    %v937 = vand.u32 %v15, 4294901760
    %v938 = vsub.f32 %v15, %v937
    %939 = vmatpush1.msra.mxu0 %v938
    %940 = vmatprep.subr.mxu0 0.0
    %v941 = vand.u32 %v16, 4294901760
    %v942 = vsub.f32 %v16, %v941
    %943 = vmatpush1.msra.mxu0 %v942
    %944 = vmatprep.subr.mxu0 0.0
    %v945 = vand.u32 %v17, 4294901760
    %v946 = vsub.f32 %v17, %v945
    %947 = vmatpush1.msra.mxu0 %v946
    %948 = vmatprep.subr.mxu0 0.0
    %v949 = vand.u32 %v18, 4294901760
    %v950 = vsub.f32 %v18, %v949
    %951 = vmatpush1.msra.mxu0 %v950
    %952 = vmatprep.subr.mxu0 0.0
    %v953 = vand.u32 %v19, 4294901760
    %v954 = vsub.f32 %v19, %v953
    %955 = vmatpush1.msra.mxu0 %v954
    %956 = vmatprep.subr.mxu0 0.0
    %v957 = vand.u32 %v20, 4294901760
    %v958 = vsub.f32 %v20, %v957
    %959 = vmatpush1.msra.mxu0 %v958
    %960 = vmatprep.subr.mxu0 0.0
    %v961 = vand.u32 %v21, 4294901760
    %v962 = vsub.f32 %v21, %v961
    %963 = vmatpush1.msra.mxu0 %v962
    %964 = vmatprep.subr.mxu0 0.0
    %v965 = vand.u32 %v22, 4294901760
    %v966 = vsub.f32 %v22, %v965
    %967 = vmatpush1.msra.mxu0 %v966
    %968 = vmatprep.subr.mxu0 0.0
    %v969 = vand.u32 %v23, 4294901760
    %v970 = vsub.f32 %v23, %v969
    %971 = vmatpush1.msra.mxu0 %v970
    %972 = vmatprep.subr.mxu0 0.0
    %v973 = vand.u32 %v24, 4294901760
    %v974 = vsub.f32 %v24, %v973
    %975 = vmatpush1.msra.mxu0 %v974
    %976 = vmatprep.subr.mxu0 0.0
    %v977 = vand.u32 %v25, 4294901760
    %v978 = vsub.f32 %v25, %v977
    %979 = vmatpush1.msra.mxu0 %v978
    %980 = vmatprep.subr.mxu0 0.0
    %v981 = vand.u32 %v26, 4294901760
    %v982 = vsub.f32 %v26, %v981
    %983 = vmatpush1.msra.mxu0 %v982
    %984 = vmatprep.subr.mxu0 0.0
    %v985 = vand.u32 %v27, 4294901760
    %v986 = vsub.f32 %v27, %v985
    %987 = vmatpush1.msra.mxu0 %v986
    %988 = vmatprep.subr.mxu0 0.0
    %v989 = vand.u32 %v28, 4294901760
    %v990 = vsub.f32 %v28, %v989
    %991 = vmatpush1.msra.mxu0 %v990
    %992 = vmatprep.subr.mxu0 0.0
    %993 = vmatpush1.msra.mxu0 0.0
    %994 = vmatprep.subr.mxu0 0.0
    %995 = vmatpush1.msra.mxu0 0.0
    %996 = vmatprep.subr.mxu0 0.0
    %997 = vmatpush1.msra.mxu0 0.0
    %998 = vmatprep.subr.mxu0 0.0
    %999 = vmatpush1.msra.mxu0 0.0
    %1000 = vmatprep.subr.mxu0 0.0
    %1001 = vmatpush1.msra.mxu0 0.0
    %1002 = vmatprep.subr.mxu0 0.0
    %1003 = vmatpush1.msra.mxu0 0.0
    %1004 = vmatprep.subr.mxu0 0.0
    %1005 = vmatpush1.msra.mxu0 0.0
    %1006 = vmatprep.subr.mxu0 0.0
    %1007 = vmatpush1.msra.mxu0 0.0
    %1008 = vmatprep.subr.mxu0 0.0
    %1009 = vmatpush1.msra.mxu0 0.0
    %1010 = vmatprep.subr.mxu0 0.0
    %1011 = vmatpush1.msra.mxu0 0.0
    %1012 = vmatprep.subr.mxu0 0.0
    %1013 = vmatpush1.msra.mxu0 0.0
    %1014 = vmatprep.subr.mxu0 0.0
    %1015 = vmatpush1.msra.mxu0 0.0
    %1016 = vmatprep.subr.mxu0 0.0
    %1017 = vmatpush1.msra.mxu0 0.0
    %1018 = vmatprep.subr.mxu0 0.0
    %1019 = vmatpush1.msra.mxu0 0.0
    %1020 = vmatprep.subr.mxu0 0.0
    %1021 = vmatpush1.msra.mxu0 0.0
    %1022 = vmatprep.subr.mxu0 0.0
    %1023 = vmatpush1.msra.mxu0 0.0
    %1024 = vmatprep.mubr.f32.mxu0 0.0
    %v1025 = vand.u32 %v685, 4294901760
    %v1026 = vsub.f32 %v685, %v1025
    %1027 = vmatmul.mubr.f32.gmra.mrb[0].mxu0 %v1026
    %v1028 = vpop.f32.mrb[0].mxu0
    %v1029 = vadd.f32 %v925, %v1028
    %v1030 = vpop.f32.mrb[0].mxu0
    %1031 = vdwg.mxu0
    %1032 = vmatprep.subr.mxu0 0.0
    %v1033 = vand.u32 %v13, 4294901760
    %1034 = vmatpush1.msra.mxu0 %v1033
    %1035 = vmatprep.subr.mxu0 0.0
    %v1036 = vand.u32 %v14, 4294901760
    %1037 = vmatpush1.msra.mxu0 %v1036
    %1038 = vmatprep.subr.mxu0 0.0
    %v1039 = vand.u32 %v15, 4294901760
    %1040 = vmatpush1.msra.mxu0 %v1039
    %1041 = vmatprep.subr.mxu0 0.0
    %v1042 = vand.u32 %v16, 4294901760
    %1043 = vmatpush1.msra.mxu0 %v1042
    %1044 = vmatprep.subr.mxu0 0.0
    %v1045 = vand.u32 %v17, 4294901760
    %1046 = vmatpush1.msra.mxu0 %v1045
    %1047 = vmatprep.subr.mxu0 0.0
    %v1048 = vand.u32 %v18, 4294901760
    %1049 = vmatpush1.msra.mxu0 %v1048
    %1050 = vmatprep.subr.mxu0 0.0
    %v1051 = vand.u32 %v19, 4294901760
    %1052 = vmatpush1.msra.mxu0 %v1051
    %1053 = vmatprep.subr.mxu0 0.0
    %v1054 = vand.u32 %v20, 4294901760
    %1055 = vmatpush1.msra.mxu0 %v1054
    %1056 = vmatprep.subr.mxu0 0.0
    %v1057 = vand.u32 %v21, 4294901760
    %1058 = vmatpush1.msra.mxu0 %v1057
    %1059 = vmatprep.subr.mxu0 0.0
    %v1060 = vand.u32 %v22, 4294901760
    %1061 = vmatpush1.msra.mxu0 %v1060
    %1062 = vmatprep.subr.mxu0 0.0
    %v1063 = vand.u32 %v23, 4294901760
    %1064 = vmatpush1.msra.mxu0 %v1063
    %1065 = vmatprep.subr.mxu0 0.0
    %v1066 = vand.u32 %v24, 4294901760
    %1067 = vmatpush1.msra.mxu0 %v1066
    %1068 = vmatprep.subr.mxu0 0.0
    %v1069 = vand.u32 %v25, 4294901760
    %1070 = vmatpush1.msra.mxu0 %v1069
    %1071 = vmatprep.subr.mxu0 0.0
    %v1072 = vand.u32 %v26, 4294901760
    %1073 = vmatpush1.msra.mxu0 %v1072
    %1074 = vmatprep.subr.mxu0 0.0
    %v1075 = vand.u32 %v27, 4294901760
    %1076 = vmatpush1.msra.mxu0 %v1075
    %1077 = vmatprep.subr.mxu0 0.0
    %v1078 = vand.u32 %v28, 4294901760
    %1079 = vmatpush1.msra.mxu0 %v1078
    %1080 = vmatprep.subr.mxu0 0.0
    %1081 = vmatpush1.msra.mxu0 0.0
    %1082 = vmatprep.subr.mxu0 0.0
    %1083 = vmatpush1.msra.mxu0 0.0
    %1084 = vmatprep.subr.mxu0 0.0
    %1085 = vmatpush1.msra.mxu0 0.0
    %1086 = vmatprep.subr.mxu0 0.0
    %1087 = vmatpush1.msra.mxu0 0.0
    %1088 = vmatprep.subr.mxu0 0.0
    %1089 = vmatpush1.msra.mxu0 0.0
    %1090 = vmatprep.subr.mxu0 0.0
    %1091 = vmatpush1.msra.mxu0 0.0
    %1092 = vmatprep.subr.mxu0 0.0
    %1093 = vmatpush1.msra.mxu0 0.0
    %1094 = vmatprep.subr.mxu0 0.0
    %1095 = vmatpush1.msra.mxu0 0.0
    %1096 = vmatprep.subr.mxu0 0.0
    %1097 = vmatpush1.msra.mxu0 0.0
    %1098 = vmatprep.subr.mxu0 0.0
    %1099 = vmatpush1.msra.mxu0 0.0
    %1100 = vmatprep.subr.mxu0 0.0
    %1101 = vmatpush1.msra.mxu0 0.0
    %1102 = vmatprep.subr.mxu0 0.0
    %1103 = vmatpush1.msra.mxu0 0.0
    %1104 = vmatprep.subr.mxu0 0.0
    %1105 = vmatpush1.msra.mxu0 0.0
    %1106 = vmatprep.subr.mxu0 0.0
    %1107 = vmatpush1.msra.mxu0 0.0
    %1108 = vmatprep.subr.mxu0 0.0
    %1109 = vmatpush1.msra.mxu0 0.0
    %1110 = vmatprep.subr.mxu0 0.0
    %1111 = vmatpush1.msra.mxu0 0.0
    %1112 = vmatprep.mubr.f32.mxu0 0.0
    %v1113 = vand.u32 %v685, 4294901760
    %v1114 = vsub.f32 %v685, %v1113
    %v1115 = vand.u32 %v1114, 4294901760
    %1116 = vmatmul.mubr.f32.gmra.mrb[0].mxu0 %v1115
    %v1117 = vpop.f32.mrb[0].mxu0
    %v1118 = vadd.f32 %v1029, %v1117
    %v1119 = vpop.f32.mrb[0].mxu0
    %1120 = vdwg.mxu0
    %1121 = vmatprep.subr.mxu0 0.0
    %v1122 = vand.u32 %v13, 4294901760
    %v1123 = vsub.f32 %v13, %v1122
    %v1124 = vand.u32 %v1123, 4294901760
    %1125 = vmatpush1.msra.mxu0 %v1124
    %1126 = vmatprep.subr.mxu0 0.0
    %v1127 = vand.u32 %v14, 4294901760
    %v1128 = vsub.f32 %v14, %v1127
    %v1129 = vand.u32 %v1128, 4294901760
    %1130 = vmatpush1.msra.mxu0 %v1129
    %1131 = vmatprep.subr.mxu0 0.0
    %v1132 = vand.u32 %v15, 4294901760
    %v1133 = vsub.f32 %v15, %v1132
    %v1134 = vand.u32 %v1133, 4294901760
    %1135 = vmatpush1.msra.mxu0 %v1134
    %1136 = vmatprep.subr.mxu0 0.0
    %v1137 = vand.u32 %v16, 4294901760
    %v1138 = vsub.f32 %v16, %v1137
    %v1139 = vand.u32 %v1138, 4294901760
    %1140 = vmatpush1.msra.mxu0 %v1139
    %1141 = vmatprep.subr.mxu0 0.0
    %v1142 = vand.u32 %v17, 4294901760
    %v1143 = vsub.f32 %v17, %v1142
    %v1144 = vand.u32 %v1143, 4294901760
    %1145 = vmatpush1.msra.mxu0 %v1144
    %1146 = vmatprep.subr.mxu0 0.0
    %v1147 = vand.u32 %v18, 4294901760
    %v1148 = vsub.f32 %v18, %v1147
    %v1149 = vand.u32 %v1148, 4294901760
    %1150 = vmatpush1.msra.mxu0 %v1149
    %1151 = vmatprep.subr.mxu0 0.0
    %v1152 = vand.u32 %v19, 4294901760
    %v1153 = vsub.f32 %v19, %v1152
    %v1154 = vand.u32 %v1153, 4294901760
    %1155 = vmatpush1.msra.mxu0 %v1154
    %1156 = vmatprep.subr.mxu0 0.0
    %v1157 = vand.u32 %v20, 4294901760
    %v1158 = vsub.f32 %v20, %v1157
    %v1159 = vand.u32 %v1158, 4294901760
    %1160 = vmatpush1.msra.mxu0 %v1159
    %1161 = vmatprep.subr.mxu0 0.0
    %v1162 = vand.u32 %v21, 4294901760
    %v1163 = vsub.f32 %v21, %v1162
    %v1164 = vand.u32 %v1163, 4294901760
    %1165 = vmatpush1.msra.mxu0 %v1164
    %1166 = vmatprep.subr.mxu0 0.0
    %v1167 = vand.u32 %v22, 4294901760
    %v1168 = vsub.f32 %v22, %v1167
    %v1169 = vand.u32 %v1168, 4294901760
    %1170 = vmatpush1.msra.mxu0 %v1169
    %1171 = vmatprep.subr.mxu0 0.0
    %v1172 = vand.u32 %v23, 4294901760
    %v1173 = vsub.f32 %v23, %v1172
    %v1174 = vand.u32 %v1173, 4294901760
    %1175 = vmatpush1.msra.mxu0 %v1174
    %1176 = vmatprep.subr.mxu0 0.0
    %v1177 = vand.u32 %v24, 4294901760
    %v1178 = vsub.f32 %v24, %v1177
    %v1179 = vand.u32 %v1178, 4294901760
    %1180 = vmatpush1.msra.mxu0 %v1179
    %1181 = vmatprep.subr.mxu0 0.0
    %v1182 = vand.u32 %v25, 4294901760
    %v1183 = vsub.f32 %v25, %v1182
    %v1184 = vand.u32 %v1183, 4294901760
    %1185 = vmatpush1.msra.mxu0 %v1184
    %1186 = vmatprep.subr.mxu0 0.0
    %v1187 = vand.u32 %v26, 4294901760
    %v1188 = vsub.f32 %v26, %v1187
    %v1189 = vand.u32 %v1188, 4294901760
    %1190 = vmatpush1.msra.mxu0 %v1189
    %1191 = vmatprep.subr.mxu0 0.0
    %v1192 = vand.u32 %v27, 4294901760
    %v1193 = vsub.f32 %v27, %v1192
    %v1194 = vand.u32 %v1193, 4294901760
    %1195 = vmatpush1.msra.mxu0 %v1194
    %1196 = vmatprep.subr.mxu0 0.0
    %v1197 = vand.u32 %v28, 4294901760
    %v1198 = vsub.f32 %v28, %v1197
    %v1199 = vand.u32 %v1198, 4294901760
    %1200 = vmatpush1.msra.mxu0 %v1199
    %1201 = vmatprep.subr.mxu0 0.0
    %1202 = vmatpush1.msra.mxu0 0.0
    %1203 = vmatprep.subr.mxu0 0.0
    %1204 = vmatpush1.msra.mxu0 0.0
    %1205 = vmatprep.subr.mxu0 0.0
    %1206 = vmatpush1.msra.mxu0 0.0
    %1207 = vmatprep.subr.mxu0 0.0
    %1208 = vmatpush1.msra.mxu0 0.0
    %1209 = vmatprep.subr.mxu0 0.0
    %1210 = vmatpush1.msra.mxu0 0.0
    %1211 = vmatprep.subr.mxu0 0.0
    %1212 = vmatpush1.msra.mxu0 0.0
    %1213 = vmatprep.subr.mxu0 0.0
    %1214 = vmatpush1.msra.mxu0 0.0
    %1215 = vmatprep.subr.mxu0 0.0
    %1216 = vmatpush1.msra.mxu0 0.0
    %1217 = vmatprep.subr.mxu0 0.0
    %1218 = vmatpush1.msra.mxu0 0.0
    %1219 = vmatprep.subr.mxu0 0.0
    %1220 = vmatpush1.msra.mxu0 0.0
    %1221 = vmatprep.subr.mxu0 0.0
    %1222 = vmatpush1.msra.mxu0 0.0
    %1223 = vmatprep.subr.mxu0 0.0
    %1224 = vmatpush1.msra.mxu0 0.0
    %1225 = vmatprep.subr.mxu0 0.0
    %1226 = vmatpush1.msra.mxu0 0.0
    %1227 = vmatprep.subr.mxu0 0.0
    %1228 = vmatpush1.msra.mxu0 0.0
    %1229 = vmatprep.subr.mxu0 0.0
    %1230 = vmatpush1.msra.mxu0 0.0
    %1231 = vmatprep.subr.mxu0 0.0
    %1232 = vmatpush1.msra.mxu0 0.0
    %1233 = vmatprep.mubr.f32.mxu0 0.0
    %v1234 = vand.u32 %v685, 4294901760
    %1235 = vmatmul.mubr.f32.gmra.mrb[0].mxu0 %v1234
    %v1236 = vpop.f32.mrb[0].mxu0
    %v1237 = vadd.f32 %v1118, %v1236
    %v1238 = vpop.f32.mrb[0].mxu0
    %1239 = vdwg.mxu0
    %1240 = vmatprep.subr.mxu0 0.0
    %v1241 = vand.u32 %v13, 4294901760
    %1242 = vmatpush1.msra.mxu0 %v1241
    %1243 = vmatprep.subr.mxu0 0.0
    %v1244 = vand.u32 %v14, 4294901760
    %1245 = vmatpush1.msra.mxu0 %v1244
    %1246 = vmatprep.subr.mxu0 0.0
    %v1247 = vand.u32 %v15, 4294901760
    %1248 = vmatpush1.msra.mxu0 %v1247
    %1249 = vmatprep.subr.mxu0 0.0
    %v1250 = vand.u32 %v16, 4294901760
    %1251 = vmatpush1.msra.mxu0 %v1250
    %1252 = vmatprep.subr.mxu0 0.0
    %v1253 = vand.u32 %v17, 4294901760
    %1254 = vmatpush1.msra.mxu0 %v1253
    %1255 = vmatprep.subr.mxu0 0.0
    %v1256 = vand.u32 %v18, 4294901760
    %1257 = vmatpush1.msra.mxu0 %v1256
    %1258 = vmatprep.subr.mxu0 0.0
    %v1259 = vand.u32 %v19, 4294901760
    %1260 = vmatpush1.msra.mxu0 %v1259
    %1261 = vmatprep.subr.mxu0 0.0
    %v1262 = vand.u32 %v20, 4294901760
    %1263 = vmatpush1.msra.mxu0 %v1262
    %1264 = vmatprep.subr.mxu0 0.0
    %v1265 = vand.u32 %v21, 4294901760
    %1266 = vmatpush1.msra.mxu0 %v1265
    %1267 = vmatprep.subr.mxu0 0.0
    %v1268 = vand.u32 %v22, 4294901760
    %1269 = vmatpush1.msra.mxu0 %v1268
    %1270 = vmatprep.subr.mxu0 0.0
    %v1271 = vand.u32 %v23, 4294901760
    %1272 = vmatpush1.msra.mxu0 %v1271
    %1273 = vmatprep.subr.mxu0 0.0
    %v1274 = vand.u32 %v24, 4294901760
    %1275 = vmatpush1.msra.mxu0 %v1274
    %1276 = vmatprep.subr.mxu0 0.0
    %v1277 = vand.u32 %v25, 4294901760
    %1278 = vmatpush1.msra.mxu0 %v1277
    %1279 = vmatprep.subr.mxu0 0.0
    %v1280 = vand.u32 %v26, 4294901760
    %1281 = vmatpush1.msra.mxu0 %v1280
    %1282 = vmatprep.subr.mxu0 0.0
    %v1283 = vand.u32 %v27, 4294901760
    %1284 = vmatpush1.msra.mxu0 %v1283
    %1285 = vmatprep.subr.mxu0 0.0
    %v1286 = vand.u32 %v28, 4294901760
    %1287 = vmatpush1.msra.mxu0 %v1286
    %1288 = vmatprep.subr.mxu0 0.0
    %1289 = vmatpush1.msra.mxu0 0.0
    %1290 = vmatprep.subr.mxu0 0.0
    %1291 = vmatpush1.msra.mxu0 0.0
    %1292 = vmatprep.subr.mxu0 0.0
    %1293 = vmatpush1.msra.mxu0 0.0
    %1294 = vmatprep.subr.mxu0 0.0
    %1295 = vmatpush1.msra.mxu0 0.0
    %1296 = vmatprep.subr.mxu0 0.0
    %1297 = vmatpush1.msra.mxu0 0.0
    %1298 = vmatprep.subr.mxu0 0.0
    %1299 = vmatpush1.msra.mxu0 0.0
    %1300 = vmatprep.subr.mxu0 0.0
    %1301 = vmatpush1.msra.mxu0 0.0
    %1302 = vmatprep.subr.mxu0 0.0
    %1303 = vmatpush1.msra.mxu0 0.0
    %1304 = vmatprep.subr.mxu0 0.0
    %1305 = vmatpush1.msra.mxu0 0.0
    %1306 = vmatprep.subr.mxu0 0.0
    %1307 = vmatpush1.msra.mxu0 0.0
    %1308 = vmatprep.subr.mxu0 0.0
    %1309 = vmatpush1.msra.mxu0 0.0
    %1310 = vmatprep.subr.mxu0 0.0
    %1311 = vmatpush1.msra.mxu0 0.0
    %1312 = vmatprep.subr.mxu0 0.0
    %1313 = vmatpush1.msra.mxu0 0.0
    %1314 = vmatprep.subr.mxu0 0.0
    %1315 = vmatpush1.msra.mxu0 0.0
    %1316 = vmatprep.subr.mxu0 0.0
    %1317 = vmatpush1.msra.mxu0 0.0
    %1318 = vmatprep.subr.mxu0 0.0
    %1319 = vmatpush1.msra.mxu0 0.0
    %1320 = vmatprep.mubr.f32.mxu0 0.0
    %v1321 = vand.u32 %v685, 4294901760
    %1322 = vmatmul.mubr.f32.gmra.mrb[0].mxu0 %v1321
    %v1323 = vpop.f32.mrb[0].mxu0
    %v1324 = vadd.f32 %v1237, %v1323
    %v1325 = vpop.f32.mrb[0].mxu0
    %1326 = vdwg.mxu0
    %1328 = vrot.lane.b32.xlu0 %v1324, 32
    %v1329 = vpop.permute.xlu0 %1328
    %vm1331 = vcmask 523520
    %1332 = vst.msk [vmem:[#allocation2] sm:$0xff] %vm1331, %v1329
    %1333 = vset.pattern.permute.xlu0 2
    %1334 = vperm.xlu0 %1333, %v12
    %v1335 = vpop.permute.xlu0 %1334
    %vm1336 = vcmp.eq.s32.totalorder %v1335, %v30
    %v1337 = vsel %vm1336, 1, 0
    %v1338 = vcvt.s32.f32 %v1337
    %1339 = vmatprep.subr.mxu0 0.0
    %v1340 = vand.u32 %v13, 4294901760
    %1341 = vmatpush1.msra.mxu0 %v1340
    %1342 = vmatprep.subr.mxu0 0.0
    %v1343 = vand.u32 %v14, 4294901760
    %1344 = vmatpush1.msra.mxu0 %v1343
    %1345 = vmatprep.subr.mxu0 0.0
    %v1346 = vand.u32 %v15, 4294901760
    %1347 = vmatpush1.msra.mxu0 %v1346
    %1348 = vmatprep.subr.mxu0 0.0
    %v1349 = vand.u32 %v16, 4294901760
    %1350 = vmatpush1.msra.mxu0 %v1349
    %1351 = vmatprep.subr.mxu0 0.0
    %v1352 = vand.u32 %v17, 4294901760
    %1353 = vmatpush1.msra.mxu0 %v1352
    %1354 = vmatprep.subr.mxu0 0.0
    %v1355 = vand.u32 %v18, 4294901760
    %1356 = vmatpush1.msra.mxu0 %v1355
    %1357 = vmatprep.subr.mxu0 0.0
    %v1358 = vand.u32 %v19, 4294901760
    %1359 = vmatpush1.msra.mxu0 %v1358
    %1360 = vmatprep.subr.mxu0 0.0
    %v1361 = vand.u32 %v20, 4294901760
    %1362 = vmatpush1.msra.mxu0 %v1361
    %1363 = vmatprep.subr.mxu0 0.0
    %v1364 = vand.u32 %v21, 4294901760
    %1365 = vmatpush1.msra.mxu0 %v1364
    %1366 = vmatprep.subr.mxu0 0.0
    %v1367 = vand.u32 %v22, 4294901760
    %1368 = vmatpush1.msra.mxu0 %v1367
    %1369 = vmatprep.subr.mxu0 0.0
    %v1370 = vand.u32 %v23, 4294901760
    %1371 = vmatpush1.msra.mxu0 %v1370
    %1372 = vmatprep.subr.mxu0 0.0
    %v1373 = vand.u32 %v24, 4294901760
    %1374 = vmatpush1.msra.mxu0 %v1373
    %1375 = vmatprep.subr.mxu0 0.0
    %v1376 = vand.u32 %v25, 4294901760
    %1377 = vmatpush1.msra.mxu0 %v1376
    %1378 = vmatprep.subr.mxu0 0.0
    %v1379 = vand.u32 %v26, 4294901760
    %1380 = vmatpush1.msra.mxu0 %v1379
    %1381 = vmatprep.subr.mxu0 0.0
    %v1382 = vand.u32 %v27, 4294901760
    %1383 = vmatpush1.msra.mxu0 %v1382
    %1384 = vmatprep.subr.mxu0 0.0
    %v1385 = vand.u32 %v28, 4294901760
    %1386 = vmatpush1.msra.mxu0 %v1385
    %1387 = vmatprep.subr.mxu0 0.0
    %1388 = vmatpush1.msra.mxu0 0.0
    %1389 = vmatprep.subr.mxu0 0.0
    %1390 = vmatpush1.msra.mxu0 0.0
    %1391 = vmatprep.subr.mxu0 0.0
    %1392 = vmatpush1.msra.mxu0 0.0
    %1393 = vmatprep.subr.mxu0 0.0
    %1394 = vmatpush1.msra.mxu0 0.0
    %1395 = vmatprep.subr.mxu0 0.0
    %1396 = vmatpush1.msra.mxu0 0.0
    %1397 = vmatprep.subr.mxu0 0.0
    %1398 = vmatpush1.msra.mxu0 0.0
    %1399 = vmatprep.subr.mxu0 0.0
    %1400 = vmatpush1.msra.mxu0 0.0
    %1401 = vmatprep.subr.mxu0 0.0
    %1402 = vmatpush1.msra.mxu0 0.0
    %1403 = vmatprep.subr.mxu0 0.0
    %1404 = vmatpush1.msra.mxu0 0.0
    %1405 = vmatprep.subr.mxu0 0.0
    %1406 = vmatpush1.msra.mxu0 0.0
    %1407 = vmatprep.subr.mxu0 0.0
    %1408 = vmatpush1.msra.mxu0 0.0
    %1409 = vmatprep.subr.mxu0 0.0
    %1410 = vmatpush1.msra.mxu0 0.0
    %1411 = vmatprep.subr.mxu0 0.0
    %1412 = vmatpush1.msra.mxu0 0.0
    %1413 = vmatprep.subr.mxu0 0.0
    %1414 = vmatpush1.msra.mxu0 0.0
    %1415 = vmatprep.subr.mxu0 0.0
    %1416 = vmatpush1.msra.mxu0 0.0
    %1417 = vmatprep.subr.mxu0 0.0
    %1418 = vmatpush1.msra.mxu0 0.0
    %1419 = vmatprep.mubr.f32.mxu0 0.0
    %v1420 = vand.u32 %v1338, 4294901760
    %v1421 = vsub.f32 %v1338, %v1420
    %v1422 = vand.u32 %v1421, 4294901760
    %v1423 = vsub.f32 %v1421, %v1422
    %v1424 = vand.u32 %v1423, 4294901760
    %1425 = vmatmul.mubr.f32.gmra.mrb[0].mxu0 %v1424
    %v1426 = vpop.f32.mrb[0].mxu0
    %v1427 = vadd.f32 0.0, %v1426
    %v1428 = vpop.f32.mrb[0].mxu0
    %1429 = vdwg.mxu0
    %1430 = vmatprep.subr.mxu0 0.0
    %v1431 = vand.u32 %v13, 4294901760
    %v1432 = vsub.f32 %v13, %v1431
    %v1433 = vand.u32 %v1432, 4294901760
    %v1434 = vsub.f32 %v1432, %v1433
    %v1435 = vand.u32 %v1434, 4294901760
    %1436 = vmatpush1.msra.mxu0 %v1435
    %1437 = vmatprep.subr.mxu0 0.0
    %v1438 = vand.u32 %v14, 4294901760
    %v1439 = vsub.f32 %v14, %v1438
    %v1440 = vand.u32 %v1439, 4294901760
    %v1441 = vsub.f32 %v1439, %v1440
    %v1442 = vand.u32 %v1441, 4294901760
    %1443 = vmatpush1.msra.mxu0 %v1442
    %1444 = vmatprep.subr.mxu0 0.0
    %v1445 = vand.u32 %v15, 4294901760
    %v1446 = vsub.f32 %v15, %v1445
    %v1447 = vand.u32 %v1446, 4294901760
    %v1448 = vsub.f32 %v1446, %v1447
    %v1449 = vand.u32 %v1448, 4294901760
    %1450 = vmatpush1.msra.mxu0 %v1449
    %1451 = vmatprep.subr.mxu0 0.0
    %v1452 = vand.u32 %v16, 4294901760
    %v1453 = vsub.f32 %v16, %v1452
    %v1454 = vand.u32 %v1453, 4294901760
    %v1455 = vsub.f32 %v1453, %v1454
    %v1456 = vand.u32 %v1455, 4294901760
    %1457 = vmatpush1.msra.mxu0 %v1456
    %1458 = vmatprep.subr.mxu0 0.0
    %v1459 = vand.u32 %v17, 4294901760
    %v1460 = vsub.f32 %v17, %v1459
    %v1461 = vand.u32 %v1460, 4294901760
    %v1462 = vsub.f32 %v1460, %v1461
    %v1463 = vand.u32 %v1462, 4294901760
    %1464 = vmatpush1.msra.mxu0 %v1463
    %1465 = vmatprep.subr.mxu0 0.0
    %v1466 = vand.u32 %v18, 4294901760
    %v1467 = vsub.f32 %v18, %v1466
    %v1468 = vand.u32 %v1467, 4294901760
    %v1469 = vsub.f32 %v1467, %v1468
    %v1470 = vand.u32 %v1469, 4294901760
    %1471 = vmatpush1.msra.mxu0 %v1470
    %1472 = vmatprep.subr.mxu0 0.0
    %v1473 = vand.u32 %v19, 4294901760
    %v1474 = vsub.f32 %v19, %v1473
    %v1475 = vand.u32 %v1474, 4294901760
    %v1476 = vsub.f32 %v1474, %v1475
    %v1477 = vand.u32 %v1476, 4294901760
    %1478 = vmatpush1.msra.mxu0 %v1477
    %1479 = vmatprep.subr.mxu0 0.0
    %v1480 = vand.u32 %v20, 4294901760
    %v1481 = vsub.f32 %v20, %v1480
    %v1482 = vand.u32 %v1481, 4294901760
    %v1483 = vsub.f32 %v1481, %v1482
    %v1484 = vand.u32 %v1483, 4294901760
    %1485 = vmatpush1.msra.mxu0 %v1484
    %1486 = vmatprep.subr.mxu0 0.0
    %v1487 = vand.u32 %v21, 4294901760
    %v1488 = vsub.f32 %v21, %v1487
    %v1489 = vand.u32 %v1488, 4294901760
    %v1490 = vsub.f32 %v1488, %v1489
    %v1491 = vand.u32 %v1490, 4294901760
    %1492 = vmatpush1.msra.mxu0 %v1491
    %1493 = vmatprep.subr.mxu0 0.0
    %v1494 = vand.u32 %v22, 4294901760
    %v1495 = vsub.f32 %v22, %v1494
    %v1496 = vand.u32 %v1495, 4294901760
    %v1497 = vsub.f32 %v1495, %v1496
    %v1498 = vand.u32 %v1497, 4294901760
    %1499 = vmatpush1.msra.mxu0 %v1498
    %1500 = vmatprep.subr.mxu0 0.0
    %v1501 = vand.u32 %v23, 4294901760
    %v1502 = vsub.f32 %v23, %v1501
    %v1503 = vand.u32 %v1502, 4294901760
    %v1504 = vsub.f32 %v1502, %v1503
    %v1505 = vand.u32 %v1504, 4294901760
    %1506 = vmatpush1.msra.mxu0 %v1505
    %1507 = vmatprep.subr.mxu0 0.0
    %v1508 = vand.u32 %v24, 4294901760
    %v1509 = vsub.f32 %v24, %v1508
    %v1510 = vand.u32 %v1509, 4294901760
    %v1511 = vsub.f32 %v1509, %v1510
    %v1512 = vand.u32 %v1511, 4294901760
    %1513 = vmatpush1.msra.mxu0 %v1512
    %1514 = vmatprep.subr.mxu0 0.0
    %v1515 = vand.u32 %v25, 4294901760
    %v1516 = vsub.f32 %v25, %v1515
    %v1517 = vand.u32 %v1516, 4294901760
    %v1518 = vsub.f32 %v1516, %v1517
    %v1519 = vand.u32 %v1518, 4294901760
    %1520 = vmatpush1.msra.mxu0 %v1519
    %1521 = vmatprep.subr.mxu0 0.0
    %v1522 = vand.u32 %v26, 4294901760
    %v1523 = vsub.f32 %v26, %v1522
    %v1524 = vand.u32 %v1523, 4294901760
    %v1525 = vsub.f32 %v1523, %v1524
    %v1526 = vand.u32 %v1525, 4294901760
    %1527 = vmatpush1.msra.mxu0 %v1526
    %1528 = vmatprep.subr.mxu0 0.0
    %v1529 = vand.u32 %v27, 4294901760
    %v1530 = vsub.f32 %v27, %v1529
    %v1531 = vand.u32 %v1530, 4294901760
    %v1532 = vsub.f32 %v1530, %v1531
    %v1533 = vand.u32 %v1532, 4294901760
    %1534 = vmatpush1.msra.mxu0 %v1533
    %1535 = vmatprep.subr.mxu0 0.0
    %v1536 = vand.u32 %v28, 4294901760
    %v1537 = vsub.f32 %v28, %v1536
    %v1538 = vand.u32 %v1537, 4294901760
    %v1539 = vsub.f32 %v1537, %v1538
    %v1540 = vand.u32 %v1539, 4294901760
    %1541 = vmatpush1.msra.mxu0 %v1540
    %1542 = vmatprep.subr.mxu0 0.0
    %1543 = vmatpush1.msra.mxu0 0.0
    %1544 = vmatprep.subr.mxu0 0.0
    %1545 = vmatpush1.msra.mxu0 0.0
    %1546 = vmatprep.subr.mxu0 0.0
    %1547 = vmatpush1.msra.mxu0 0.0
    %1548 = vmatprep.subr.mxu0 0.0
    %1549 = vmatpush1.msra.mxu0 0.0
    %1550 = vmatprep.subr.mxu0 0.0
    %1551 = vmatpush1.msra.mxu0 0.0
    %1552 = vmatprep.subr.mxu0 0.0
    %1553 = vmatpush1.msra.mxu0 0.0
    %1554 = vmatprep.subr.mxu0 0.0
    %1555 = vmatpush1.msra.mxu0 0.0
    %1556 = vmatprep.subr.mxu0 0.0
    %1557 = vmatpush1.msra.mxu0 0.0
    %1558 = vmatprep.subr.mxu0 0.0
    %1559 = vmatpush1.msra.mxu0 0.0
    %1560 = vmatprep.subr.mxu0 0.0
    %1561 = vmatpush1.msra.mxu0 0.0
    %1562 = vmatprep.subr.mxu0 0.0
    %1563 = vmatpush1.msra.mxu0 0.0
    %1564 = vmatprep.subr.mxu0 0.0
    %1565 = vmatpush1.msra.mxu0 0.0
    %1566 = vmatprep.subr.mxu0 0.0
    %1567 = vmatpush1.msra.mxu0 0.0
    %1568 = vmatprep.subr.mxu0 0.0
    %1569 = vmatpush1.msra.mxu0 0.0
    %1570 = vmatprep.subr.mxu0 0.0
    %1571 = vmatpush1.msra.mxu0 0.0
    %1572 = vmatprep.subr.mxu0 0.0
    %1573 = vmatpush1.msra.mxu0 0.0
    %1574 = vmatprep.mubr.f32.mxu0 0.0
    %v1575 = vand.u32 %v1338, 4294901760
    %1576 = vmatmul.mubr.f32.gmra.mrb[0].mxu0 %v1575
    %v1577 = vpop.f32.mrb[0].mxu0
    %v1578 = vadd.f32 %v1427, %v1577
    %v1579 = vpop.f32.mrb[0].mxu0
    %1580 = vdwg.mxu0
    %1581 = vmatprep.subr.mxu0 0.0
    %v1582 = vand.u32 %v13, 4294901760
    %v1583 = vsub.f32 %v13, %v1582
    %1584 = vmatpush1.msra.mxu0 %v1583
    %1585 = vmatprep.subr.mxu0 0.0
    %v1586 = vand.u32 %v14, 4294901760
    %v1587 = vsub.f32 %v14, %v1586
    %1588 = vmatpush1.msra.mxu0 %v1587
    %1589 = vmatprep.subr.mxu0 0.0
    %v1590 = vand.u32 %v15, 4294901760
    %v1591 = vsub.f32 %v15, %v1590
    %1592 = vmatpush1.msra.mxu0 %v1591
    %1593 = vmatprep.subr.mxu0 0.0
    %v1594 = vand.u32 %v16, 4294901760
    %v1595 = vsub.f32 %v16, %v1594
    %1596 = vmatpush1.msra.mxu0 %v1595
    %1597 = vmatprep.subr.mxu0 0.0
    %v1598 = vand.u32 %v17, 4294901760
    %v1599 = vsub.f32 %v17, %v1598
    %1600 = vmatpush1.msra.mxu0 %v1599
    %1601 = vmatprep.subr.mxu0 0.0
    %v1602 = vand.u32 %v18, 4294901760
    %v1603 = vsub.f32 %v18, %v1602
    %1604 = vmatpush1.msra.mxu0 %v1603
    %1605 = vmatprep.subr.mxu0 0.0
    %v1606 = vand.u32 %v19, 4294901760
    %v1607 = vsub.f32 %v19, %v1606
    %1608 = vmatpush1.msra.mxu0 %v1607
    %1609 = vmatprep.subr.mxu0 0.0
    %v1610 = vand.u32 %v20, 4294901760
    %v1611 = vsub.f32 %v20, %v1610
    %1612 = vmatpush1.msra.mxu0 %v1611
    %1613 = vmatprep.subr.mxu0 0.0
    %v1614 = vand.u32 %v21, 4294901760
    %v1615 = vsub.f32 %v21, %v1614
    %1616 = vmatpush1.msra.mxu0 %v1615
    %1617 = vmatprep.subr.mxu0 0.0
    %v1618 = vand.u32 %v22, 4294901760
    %v1619 = vsub.f32 %v22, %v1618
    %1620 = vmatpush1.msra.mxu0 %v1619
    %1621 = vmatprep.subr.mxu0 0.0
    %v1622 = vand.u32 %v23, 4294901760
    %v1623 = vsub.f32 %v23, %v1622
    %1624 = vmatpush1.msra.mxu0 %v1623
    %1625 = vmatprep.subr.mxu0 0.0
    %v1626 = vand.u32 %v24, 4294901760
    %v1627 = vsub.f32 %v24, %v1626
    %1628 = vmatpush1.msra.mxu0 %v1627
    %1629 = vmatprep.subr.mxu0 0.0
    %v1630 = vand.u32 %v25, 4294901760
    %v1631 = vsub.f32 %v25, %v1630
    %1632 = vmatpush1.msra.mxu0 %v1631
    %1633 = vmatprep.subr.mxu0 0.0
    %v1634 = vand.u32 %v26, 4294901760
    %v1635 = vsub.f32 %v26, %v1634
    %1636 = vmatpush1.msra.mxu0 %v1635
    %1637 = vmatprep.subr.mxu0 0.0
    %v1638 = vand.u32 %v27, 4294901760
    %v1639 = vsub.f32 %v27, %v1638
    %1640 = vmatpush1.msra.mxu0 %v1639
    %1641 = vmatprep.subr.mxu0 0.0
    %v1642 = vand.u32 %v28, 4294901760
    %v1643 = vsub.f32 %v28, %v1642
    %1644 = vmatpush1.msra.mxu0 %v1643
    %1645 = vmatprep.subr.mxu0 0.0
    %1646 = vmatpush1.msra.mxu0 0.0
    %1647 = vmatprep.subr.mxu0 0.0
    %1648 = vmatpush1.msra.mxu0 0.0
    %1649 = vmatprep.subr.mxu0 0.0
    %1650 = vmatpush1.msra.mxu0 0.0
    %1651 = vmatprep.subr.mxu0 0.0
    %1652 = vmatpush1.msra.mxu0 0.0
    %1653 = vmatprep.subr.mxu0 0.0
    %1654 = vmatpush1.msra.mxu0 0.0
    %1655 = vmatprep.subr.mxu0 0.0
    %1656 = vmatpush1.msra.mxu0 0.0
    %1657 = vmatprep.subr.mxu0 0.0
    %1658 = vmatpush1.msra.mxu0 0.0
    %1659 = vmatprep.subr.mxu0 0.0
    %1660 = vmatpush1.msra.mxu0 0.0
    %1661 = vmatprep.subr.mxu0 0.0
    %1662 = vmatpush1.msra.mxu0 0.0
    %1663 = vmatprep.subr.mxu0 0.0
    %1664 = vmatpush1.msra.mxu0 0.0
    %1665 = vmatprep.subr.mxu0 0.0
    %1666 = vmatpush1.msra.mxu0 0.0
    %1667 = vmatprep.subr.mxu0 0.0
    %1668 = vmatpush1.msra.mxu0 0.0
    %1669 = vmatprep.subr.mxu0 0.0
    %1670 = vmatpush1.msra.mxu0 0.0
    %1671 = vmatprep.subr.mxu0 0.0
    %1672 = vmatpush1.msra.mxu0 0.0
    %1673 = vmatprep.subr.mxu0 0.0
    %1674 = vmatpush1.msra.mxu0 0.0
    %1675 = vmatprep.subr.mxu0 0.0
    %1676 = vmatpush1.msra.mxu0 0.0
    %1677 = vmatprep.mubr.f32.mxu0 0.0
    %v1678 = vand.u32 %v1338, 4294901760
    %v1679 = vsub.f32 %v1338, %v1678
    %1680 = vmatmul.mubr.f32.gmra.mrb[0].mxu0 %v1679
    %v1681 = vpop.f32.mrb[0].mxu0
    %v1682 = vadd.f32 %v1578, %v1681
    %v1683 = vpop.f32.mrb[0].mxu0
    %1684 = vdwg.mxu0
    %1685 = vmatprep.subr.mxu0 0.0
    %v1686 = vand.u32 %v13, 4294901760
    %1687 = vmatpush1.msra.mxu0 %v1686
    %1688 = vmatprep.subr.mxu0 0.0
    %v1689 = vand.u32 %v14, 4294901760
    %1690 = vmatpush1.msra.mxu0 %v1689
    %1691 = vmatprep.subr.mxu0 0.0
    %v1692 = vand.u32 %v15, 4294901760
    %1693 = vmatpush1.msra.mxu0 %v1692
    %1694 = vmatprep.subr.mxu0 0.0
    %v1695 = vand.u32 %v16, 4294901760
    %1696 = vmatpush1.msra.mxu0 %v1695
    %1697 = vmatprep.subr.mxu0 0.0
    %v1698 = vand.u32 %v17, 4294901760
    %1699 = vmatpush1.msra.mxu0 %v1698
    %1700 = vmatprep.subr.mxu0 0.0
    %v1701 = vand.u32 %v18, 4294901760
    %1702 = vmatpush1.msra.mxu0 %v1701
    %1703 = vmatprep.subr.mxu0 0.0
    %v1704 = vand.u32 %v19, 4294901760
    %1705 = vmatpush1.msra.mxu0 %v1704
    %1706 = vmatprep.subr.mxu0 0.0
    %v1707 = vand.u32 %v20, 4294901760
    %1708 = vmatpush1.msra.mxu0 %v1707
    %1709 = vmatprep.subr.mxu0 0.0
    %v1710 = vand.u32 %v21, 4294901760
    %1711 = vmatpush1.msra.mxu0 %v1710
    %1712 = vmatprep.subr.mxu0 0.0
    %v1713 = vand.u32 %v22, 4294901760
    %1714 = vmatpush1.msra.mxu0 %v1713
    %1715 = vmatprep.subr.mxu0 0.0
    %v1716 = vand.u32 %v23, 4294901760
    %1717 = vmatpush1.msra.mxu0 %v1716
    %1718 = vmatprep.subr.mxu0 0.0
    %v1719 = vand.u32 %v24, 4294901760
    %1720 = vmatpush1.msra.mxu0 %v1719
    %1721 = vmatprep.subr.mxu0 0.0
    %v1722 = vand.u32 %v25, 4294901760
    %1723 = vmatpush1.msra.mxu0 %v1722
    %1724 = vmatprep.subr.mxu0 0.0
    %v1725 = vand.u32 %v26, 4294901760
    %1726 = vmatpush1.msra.mxu0 %v1725
    %1727 = vmatprep.subr.mxu0 0.0
    %v1728 = vand.u32 %v27, 4294901760
    %1729 = vmatpush1.msra.mxu0 %v1728
    %1730 = vmatprep.subr.mxu0 0.0
    %v1731 = vand.u32 %v28, 4294901760
    %1732 = vmatpush1.msra.mxu0 %v1731
    %1733 = vmatprep.subr.mxu0 0.0
    %1734 = vmatpush1.msra.mxu0 0.0
    %1735 = vmatprep.subr.mxu0 0.0
    %1736 = vmatpush1.msra.mxu0 0.0
    %1737 = vmatprep.subr.mxu0 0.0
    %1738 = vmatpush1.msra.mxu0 0.0
    %1739 = vmatprep.subr.mxu0 0.0
    %1740 = vmatpush1.msra.mxu0 0.0
    %1741 = vmatprep.subr.mxu0 0.0
    %1742 = vmatpush1.msra.mxu0 0.0
    %1743 = vmatprep.subr.mxu0 0.0
    %1744 = vmatpush1.msra.mxu0 0.0
    %1745 = vmatprep.subr.mxu0 0.0
    %1746 = vmatpush1.msra.mxu0 0.0
    %1747 = vmatprep.subr.mxu0 0.0
    %1748 = vmatpush1.msra.mxu0 0.0
    %1749 = vmatprep.subr.mxu0 0.0
    %1750 = vmatpush1.msra.mxu0 0.0
    %1751 = vmatprep.subr.mxu0 0.0
    %1752 = vmatpush1.msra.mxu0 0.0
    %1753 = vmatprep.subr.mxu0 0.0
    %1754 = vmatpush1.msra.mxu0 0.0
    %1755 = vmatprep.subr.mxu0 0.0
    %1756 = vmatpush1.msra.mxu0 0.0
    %1757 = vmatprep.subr.mxu0 0.0
    %1758 = vmatpush1.msra.mxu0 0.0
    %1759 = vmatprep.subr.mxu0 0.0
    %1760 = vmatpush1.msra.mxu0 0.0
    %1761 = vmatprep.subr.mxu0 0.0
    %1762 = vmatpush1.msra.mxu0 0.0
    %1763 = vmatprep.subr.mxu0 0.0
    %1764 = vmatpush1.msra.mxu0 0.0
    %1765 = vmatprep.mubr.f32.mxu0 0.0
    %v1766 = vand.u32 %v1338, 4294901760
    %v1767 = vsub.f32 %v1338, %v1766
    %v1768 = vand.u32 %v1767, 4294901760
    %1769 = vmatmul.mubr.f32.gmra.mrb[0].mxu0 %v1768
    %v1770 = vpop.f32.mrb[0].mxu0
    %v1771 = vadd.f32 %v1682, %v1770
    %v1772 = vpop.f32.mrb[0].mxu0
    %1773 = vdwg.mxu0
    %1774 = vmatprep.subr.mxu0 0.0
    %v1775 = vand.u32 %v13, 4294901760
    %v1776 = vsub.f32 %v13, %v1775
    %v1777 = vand.u32 %v1776, 4294901760
    %1778 = vmatpush1.msra.mxu0 %v1777
    %1779 = vmatprep.subr.mxu0 0.0
    %v1780 = vand.u32 %v14, 4294901760
    %v1781 = vsub.f32 %v14, %v1780
    %v1782 = vand.u32 %v1781, 4294901760
    %1783 = vmatpush1.msra.mxu0 %v1782
    %1784 = vmatprep.subr.mxu0 0.0
    %v1785 = vand.u32 %v15, 4294901760
    %v1786 = vsub.f32 %v15, %v1785
    %v1787 = vand.u32 %v1786, 4294901760
    %1788 = vmatpush1.msra.mxu0 %v1787
    %1789 = vmatprep.subr.mxu0 0.0
    %v1790 = vand.u32 %v16, 4294901760
    %v1791 = vsub.f32 %v16, %v1790
    %v1792 = vand.u32 %v1791, 4294901760
    %1793 = vmatpush1.msra.mxu0 %v1792
    %1794 = vmatprep.subr.mxu0 0.0
    %v1795 = vand.u32 %v17, 4294901760
    %v1796 = vsub.f32 %v17, %v1795
    %v1797 = vand.u32 %v1796, 4294901760
    %1798 = vmatpush1.msra.mxu0 %v1797
    %1799 = vmatprep.subr.mxu0 0.0
    %v1800 = vand.u32 %v18, 4294901760
    %v1801 = vsub.f32 %v18, %v1800
    %v1802 = vand.u32 %v1801, 4294901760
    %1803 = vmatpush1.msra.mxu0 %v1802
    %1804 = vmatprep.subr.mxu0 0.0
    %v1805 = vand.u32 %v19, 4294901760
    %v1806 = vsub.f32 %v19, %v1805
    %v1807 = vand.u32 %v1806, 4294901760
    %1808 = vmatpush1.msra.mxu0 %v1807
    %1809 = vmatprep.subr.mxu0 0.0
    %v1810 = vand.u32 %v20, 4294901760
    %v1811 = vsub.f32 %v20, %v1810
    %v1812 = vand.u32 %v1811, 4294901760
    %1813 = vmatpush1.msra.mxu0 %v1812
    %1814 = vmatprep.subr.mxu0 0.0
    %v1815 = vand.u32 %v21, 4294901760
    %v1816 = vsub.f32 %v21, %v1815
    %v1817 = vand.u32 %v1816, 4294901760
    %1818 = vmatpush1.msra.mxu0 %v1817
    %1819 = vmatprep.subr.mxu0 0.0
    %v1820 = vand.u32 %v22, 4294901760
    %v1821 = vsub.f32 %v22, %v1820
    %v1822 = vand.u32 %v1821, 4294901760
    %1823 = vmatpush1.msra.mxu0 %v1822
    %1824 = vmatprep.subr.mxu0 0.0
    %v1825 = vand.u32 %v23, 4294901760
    %v1826 = vsub.f32 %v23, %v1825
    %v1827 = vand.u32 %v1826, 4294901760
    %1828 = vmatpush1.msra.mxu0 %v1827
    %1829 = vmatprep.subr.mxu0 0.0
    %v1830 = vand.u32 %v24, 4294901760
    %v1831 = vsub.f32 %v24, %v1830
    %v1832 = vand.u32 %v1831, 4294901760
    %1833 = vmatpush1.msra.mxu0 %v1832
    %1834 = vmatprep.subr.mxu0 0.0
    %v1835 = vand.u32 %v25, 4294901760
    %v1836 = vsub.f32 %v25, %v1835
    %v1837 = vand.u32 %v1836, 4294901760
    %1838 = vmatpush1.msra.mxu0 %v1837
    %1839 = vmatprep.subr.mxu0 0.0
    %v1840 = vand.u32 %v26, 4294901760
    %v1841 = vsub.f32 %v26, %v1840
    %v1842 = vand.u32 %v1841, 4294901760
    %1843 = vmatpush1.msra.mxu0 %v1842
    %1844 = vmatprep.subr.mxu0 0.0
    %v1845 = vand.u32 %v27, 4294901760
    %v1846 = vsub.f32 %v27, %v1845
    %v1847 = vand.u32 %v1846, 4294901760
    %1848 = vmatpush1.msra.mxu0 %v1847
    %1849 = vmatprep.subr.mxu0 0.0
    %v1850 = vand.u32 %v28, 4294901760
    %v1851 = vsub.f32 %v28, %v1850
    %v1852 = vand.u32 %v1851, 4294901760
    %1853 = vmatpush1.msra.mxu0 %v1852
    %1854 = vmatprep.subr.mxu0 0.0
    %1855 = vmatpush1.msra.mxu0 0.0
    %1856 = vmatprep.subr.mxu0 0.0
    %1857 = vmatpush1.msra.mxu0 0.0
    %1858 = vmatprep.subr.mxu0 0.0
    %1859 = vmatpush1.msra.mxu0 0.0
    %1860 = vmatprep.subr.mxu0 0.0
    %1861 = vmatpush1.msra.mxu0 0.0
    %1862 = vmatprep.subr.mxu0 0.0
    %1863 = vmatpush1.msra.mxu0 0.0
    %1864 = vmatprep.subr.mxu0 0.0
    %1865 = vmatpush1.msra.mxu0 0.0
    %1866 = vmatprep.subr.mxu0 0.0
    %1867 = vmatpush1.msra.mxu0 0.0
    %1868 = vmatprep.subr.mxu0 0.0
    %1869 = vmatpush1.msra.mxu0 0.0
    %1870 = vmatprep.subr.mxu0 0.0
    %1871 = vmatpush1.msra.mxu0 0.0
    %1872 = vmatprep.subr.mxu0 0.0
    %1873 = vmatpush1.msra.mxu0 0.0
    %1874 = vmatprep.subr.mxu0 0.0
    %1875 = vmatpush1.msra.mxu0 0.0
    %1876 = vmatprep.subr.mxu0 0.0
    %1877 = vmatpush1.msra.mxu0 0.0
    %1878 = vmatprep.subr.mxu0 0.0
    %1879 = vmatpush1.msra.mxu0 0.0
    %1880 = vmatprep.subr.mxu0 0.0
    %1881 = vmatpush1.msra.mxu0 0.0
    %1882 = vmatprep.subr.mxu0 0.0
    %1883 = vmatpush1.msra.mxu0 0.0
    %1884 = vmatprep.subr.mxu0 0.0
    %1885 = vmatpush1.msra.mxu0 0.0
    %1886 = vmatprep.mubr.f32.mxu0 0.0
    %v1887 = vand.u32 %v1338, 4294901760
    %1888 = vmatmul.mubr.f32.gmra.mrb[0].mxu0 %v1887
    %v1889 = vpop.f32.mrb[0].mxu0
    %v1890 = vadd.f32 %v1771, %v1889
    %v1891 = vpop.f32.mrb[0].mxu0
    %1892 = vdwg.mxu0
    %1893 = vmatprep.subr.mxu0 0.0
    %v1894 = vand.u32 %v13, 4294901760
    %1895 = vmatpush1.msra.mxu0 %v1894
    %1896 = vmatprep.subr.mxu0 0.0
    %v1897 = vand.u32 %v14, 4294901760
    %1898 = vmatpush1.msra.mxu0 %v1897
    %1899 = vmatprep.subr.mxu0 0.0
    %v1900 = vand.u32 %v15, 4294901760
    %1901 = vmatpush1.msra.mxu0 %v1900
    %1902 = vmatprep.subr.mxu0 0.0
    %v1903 = vand.u32 %v16, 4294901760
    %1904 = vmatpush1.msra.mxu0 %v1903
    %1905 = vmatprep.subr.mxu0 0.0
    %v1906 = vand.u32 %v17, 4294901760
    %1907 = vmatpush1.msra.mxu0 %v1906
    %1908 = vmatprep.subr.mxu0 0.0
    %v1909 = vand.u32 %v18, 4294901760
    %1910 = vmatpush1.msra.mxu0 %v1909
    %1911 = vmatprep.subr.mxu0 0.0
    %v1912 = vand.u32 %v19, 4294901760
    %1913 = vmatpush1.msra.mxu0 %v1912
    %1914 = vmatprep.subr.mxu0 0.0
    %v1915 = vand.u32 %v20, 4294901760
    %1916 = vmatpush1.msra.mxu0 %v1915
    %1917 = vmatprep.subr.mxu0 0.0
    %v1918 = vand.u32 %v21, 4294901760
    %1919 = vmatpush1.msra.mxu0 %v1918
    %1920 = vmatprep.subr.mxu0 0.0
    %v1921 = vand.u32 %v22, 4294901760
    %1922 = vmatpush1.msra.mxu0 %v1921
    %1923 = vmatprep.subr.mxu0 0.0
    %v1924 = vand.u32 %v23, 4294901760
    %1925 = vmatpush1.msra.mxu0 %v1924
    %1926 = vmatprep.subr.mxu0 0.0
    %v1927 = vand.u32 %v24, 4294901760
    %1928 = vmatpush1.msra.mxu0 %v1927
    %1929 = vmatprep.subr.mxu0 0.0
    %v1930 = vand.u32 %v25, 4294901760
    %1931 = vmatpush1.msra.mxu0 %v1930
    %1932 = vmatprep.subr.mxu0 0.0
    %v1933 = vand.u32 %v26, 4294901760
    %1934 = vmatpush1.msra.mxu0 %v1933
    %1935 = vmatprep.subr.mxu0 0.0
    %v1936 = vand.u32 %v27, 4294901760
    %1937 = vmatpush1.msra.mxu0 %v1936
    %1938 = vmatprep.subr.mxu0 0.0
    %v1939 = vand.u32 %v28, 4294901760
    %1940 = vmatpush1.msra.mxu0 %v1939
    %1941 = vmatprep.subr.mxu0 0.0
    %1942 = vmatpush1.msra.mxu0 0.0
    %1943 = vmatprep.subr.mxu0 0.0
    %1944 = vmatpush1.msra.mxu0 0.0
    %1945 = vmatprep.subr.mxu0 0.0
    %1946 = vmatpush1.msra.mxu0 0.0
    %1947 = vmatprep.subr.mxu0 0.0
    %1948 = vmatpush1.msra.mxu0 0.0
    %1949 = vmatprep.subr.mxu0 0.0
    %1950 = vmatpush1.msra.mxu0 0.0
    %1951 = vmatprep.subr.mxu0 0.0
    %1952 = vmatpush1.msra.mxu0 0.0
    %1953 = vmatprep.subr.mxu0 0.0
    %1954 = vmatpush1.msra.mxu0 0.0
    %1955 = vmatprep.subr.mxu0 0.0
    %1956 = vmatpush1.msra.mxu0 0.0
    %1957 = vmatprep.subr.mxu0 0.0
    %1958 = vmatpush1.msra.mxu0 0.0
    %1959 = vmatprep.subr.mxu0 0.0
    %1960 = vmatpush1.msra.mxu0 0.0
    %1961 = vmatprep.subr.mxu0 0.0
    %1962 = vmatpush1.msra.mxu0 0.0
    %1963 = vmatprep.subr.mxu0 0.0
    %1964 = vmatpush1.msra.mxu0 0.0
    %1965 = vmatprep.subr.mxu0 0.0
    %1966 = vmatpush1.msra.mxu0 0.0
    %1967 = vmatprep.subr.mxu0 0.0
    %1968 = vmatpush1.msra.mxu0 0.0
    %1969 = vmatprep.subr.mxu0 0.0
    %1970 = vmatpush1.msra.mxu0 0.0
    %1971 = vmatprep.subr.mxu0 0.0
    %1972 = vmatpush1.msra.mxu0 0.0
    %1973 = vmatprep.mubr.f32.mxu0 0.0
    %v1974 = vand.u32 %v1338, 4294901760
    %1975 = vmatmul.mubr.f32.gmra.mrb[0].mxu0 %v1974
    %v1976 = vpop.f32.mrb[0].mxu0
    %v1977 = vadd.f32 %v1890, %v1976
    %v1978 = vpop.f32.mrb[0].mxu0
    %1979 = vdwg.mxu0
    %1981 = vrot.lane.b32.xlu0 %v1977, 64
    %v1982 = vpop.permute.xlu0 %1981
    %vm1984 = vcmask 785920
    %1985 = vst.msk [vmem:[#allocation2] sm:$0xff] %vm1984, %v1982
    %1986 = vset.pattern.permute.xlu0 3
    %1987 = vperm.xlu0 %1986, %v12
    %v1988 = vpop.permute.xlu0 %1987
    %vm1989 = vcmp.eq.s32.totalorder %v1988, %v30
    %v1990 = vsel %vm1989, 1, 0
    %v1991 = vcvt.s32.f32 %v1990
    %1992 = vmatprep.subr.mxu0 0.0
    %v1993 = vand.u32 %v13, 4294901760
    %1994 = vmatpush1.msra.mxu0 %v1993
    %1995 = vmatprep.subr.mxu0 0.0
    %v1996 = vand.u32 %v14, 4294901760
    %1997 = vmatpush1.msra.mxu0 %v1996
    %1998 = vmatprep.subr.mxu0 0.0
    %v1999 = vand.u32 %v15, 4294901760
    %2000 = vmatpush1.msra.mxu0 %v1999
    %2001 = vmatprep.subr.mxu0 0.0
    %v2002 = vand.u32 %v16, 4294901760
    %2003 = vmatpush1.msra.mxu0 %v2002
    %2004 = vmatprep.subr.mxu0 0.0
    %v2005 = vand.u32 %v17, 4294901760
    %2006 = vmatpush1.msra.mxu0 %v2005
    %2007 = vmatprep.subr.mxu0 0.0
    %v2008 = vand.u32 %v18, 4294901760
    %2009 = vmatpush1.msra.mxu0 %v2008
    %2010 = vmatprep.subr.mxu0 0.0
    %v2011 = vand.u32 %v19, 4294901760
    %2012 = vmatpush1.msra.mxu0 %v2011
    %2013 = vmatprep.subr.mxu0 0.0
    %v2014 = vand.u32 %v20, 4294901760
    %2015 = vmatpush1.msra.mxu0 %v2014
    %2016 = vmatprep.subr.mxu0 0.0
    %v2017 = vand.u32 %v21, 4294901760
    %2018 = vmatpush1.msra.mxu0 %v2017
    %2019 = vmatprep.subr.mxu0 0.0
    %v2020 = vand.u32 %v22, 4294901760
    %2021 = vmatpush1.msra.mxu0 %v2020
    %2022 = vmatprep.subr.mxu0 0.0
    %v2023 = vand.u32 %v23, 4294901760
    %2024 = vmatpush1.msra.mxu0 %v2023
    %2025 = vmatprep.subr.mxu0 0.0
    %v2026 = vand.u32 %v24, 4294901760
    %2027 = vmatpush1.msra.mxu0 %v2026
    %2028 = vmatprep.subr.mxu0 0.0
    %v2029 = vand.u32 %v25, 4294901760
    %2030 = vmatpush1.msra.mxu0 %v2029
    %2031 = vmatprep.subr.mxu0 0.0
    %v2032 = vand.u32 %v26, 4294901760
    %2033 = vmatpush1.msra.mxu0 %v2032
    %2034 = vmatprep.subr.mxu0 0.0
    %v2035 = vand.u32 %v27, 4294901760
    %2036 = vmatpush1.msra.mxu0 %v2035
    %2037 = vmatprep.subr.mxu0 0.0
    %v2038 = vand.u32 %v28, 4294901760
    %2039 = vmatpush1.msra.mxu0 %v2038
    %2040 = vmatprep.subr.mxu0 0.0
    %2041 = vmatpush1.msra.mxu0 0.0
    %2042 = vmatprep.subr.mxu0 0.0
    %2043 = vmatpush1.msra.mxu0 0.0
    %2044 = vmatprep.subr.mxu0 0.0
    %2045 = vmatpush1.msra.mxu0 0.0
    %2046 = vmatprep.subr.mxu0 0.0
    %2047 = vmatpush1.msra.mxu0 0.0
    %2048 = vmatprep.subr.mxu0 0.0
    %2049 = vmatpush1.msra.mxu0 0.0
    %2050 = vmatprep.subr.mxu0 0.0
    %2051 = vmatpush1.msra.mxu0 0.0
    %2052 = vmatprep.subr.mxu0 0.0
    %2053 = vmatpush1.msra.mxu0 0.0
    %2054 = vmatprep.subr.mxu0 0.0
    %2055 = vmatpush1.msra.mxu0 0.0
    %2056 = vmatprep.subr.mxu0 0.0
    %2057 = vmatpush1.msra.mxu0 0.0
    %2058 = vmatprep.subr.mxu0 0.0
    %2059 = vmatpush1.msra.mxu0 0.0
    %2060 = vmatprep.subr.mxu0 0.0
    %2061 = vmatpush1.msra.mxu0 0.0
    %2062 = vmatprep.subr.mxu0 0.0
    %2063 = vmatpush1.msra.mxu0 0.0
    %2064 = vmatprep.subr.mxu0 0.0
    %2065 = vmatpush1.msra.mxu0 0.0
    %2066 = vmatprep.subr.mxu0 0.0
    %2067 = vmatpush1.msra.mxu0 0.0
    %2068 = vmatprep.subr.mxu0 0.0
    %2069 = vmatpush1.msra.mxu0 0.0
    %2070 = vmatprep.subr.mxu0 0.0
    %2071 = vmatpush1.msra.mxu0 0.0
    %2072 = vmatprep.mubr.f32.mxu0 0.0
    %v2073 = vand.u32 %v1991, 4294901760
    %v2074 = vsub.f32 %v1991, %v2073
    %v2075 = vand.u32 %v2074, 4294901760
    %v2076 = vsub.f32 %v2074, %v2075
    %v2077 = vand.u32 %v2076, 4294901760
    %2078 = vmatmul.mubr.f32.gmra.mrb[0].mxu0 %v2077
    %v2079 = vpop.f32.mrb[0].mxu0
    %v2080 = vadd.f32 0.0, %v2079
    %v2081 = vpop.f32.mrb[0].mxu0
    %2082 = vdwg.mxu0
    %2083 = vmatprep.subr.mxu0 0.0
    %v2084 = vand.u32 %v13, 4294901760
    %v2085 = vsub.f32 %v13, %v2084
    %v2086 = vand.u32 %v2085, 4294901760
    %v2087 = vsub.f32 %v2085, %v2086
    %v2088 = vand.u32 %v2087, 4294901760
    %2089 = vmatpush1.msra.mxu0 %v2088
    %2090 = vmatprep.subr.mxu0 0.0
    %v2091 = vand.u32 %v14, 4294901760
    %v2092 = vsub.f32 %v14, %v2091
    %v2093 = vand.u32 %v2092, 4294901760
    %v2094 = vsub.f32 %v2092, %v2093
    %v2095 = vand.u32 %v2094, 4294901760
    %2096 = vmatpush1.msra.mxu0 %v2095
    %2097 = vmatprep.subr.mxu0 0.0
    %v2098 = vand.u32 %v15, 4294901760
    %v2099 = vsub.f32 %v15, %v2098
    %v2100 = vand.u32 %v2099, 4294901760
    %v2101 = vsub.f32 %v2099, %v2100
    %v2102 = vand.u32 %v2101, 4294901760
    %2103 = vmatpush1.msra.mxu0 %v2102
    %2104 = vmatprep.subr.mxu0 0.0
    %v2105 = vand.u32 %v16, 4294901760
    %v2106 = vsub.f32 %v16, %v2105
    %v2107 = vand.u32 %v2106, 4294901760
    %v2108 = vsub.f32 %v2106, %v2107
    %v2109 = vand.u32 %v2108, 4294901760
    %2110 = vmatpush1.msra.mxu0 %v2109
    %2111 = vmatprep.subr.mxu0 0.0
    %v2112 = vand.u32 %v17, 4294901760
    %v2113 = vsub.f32 %v17, %v2112
    %v2114 = vand.u32 %v2113, 4294901760
    %v2115 = vsub.f32 %v2113, %v2114
    %v2116 = vand.u32 %v2115, 4294901760
    %2117 = vmatpush1.msra.mxu0 %v2116
    %2118 = vmatprep.subr.mxu0 0.0
    %v2119 = vand.u32 %v18, 4294901760
    %v2120 = vsub.f32 %v18, %v2119
    %v2121 = vand.u32 %v2120, 4294901760
    %v2122 = vsub.f32 %v2120, %v2121
    %v2123 = vand.u32 %v2122, 4294901760
    %2124 = vmatpush1.msra.mxu0 %v2123
    %2125 = vmatprep.subr.mxu0 0.0
    %v2126 = vand.u32 %v19, 4294901760
    %v2127 = vsub.f32 %v19, %v2126
    %v2128 = vand.u32 %v2127, 4294901760
    %v2129 = vsub.f32 %v2127, %v2128
    %v2130 = vand.u32 %v2129, 4294901760
    %2131 = vmatpush1.msra.mxu0 %v2130
    %2132 = vmatprep.subr.mxu0 0.0
    %v2133 = vand.u32 %v20, 4294901760
    %v2134 = vsub.f32 %v20, %v2133
    %v2135 = vand.u32 %v2134, 4294901760
    %v2136 = vsub.f32 %v2134, %v2135
    %v2137 = vand.u32 %v2136, 4294901760
    %2138 = vmatpush1.msra.mxu0 %v2137
    %2139 = vmatprep.subr.mxu0 0.0
    %v2140 = vand.u32 %v21, 4294901760
    %v2141 = vsub.f32 %v21, %v2140
    %v2142 = vand.u32 %v2141, 4294901760
    %v2143 = vsub.f32 %v2141, %v2142
    %v2144 = vand.u32 %v2143, 4294901760
    %2145 = vmatpush1.msra.mxu0 %v2144
    %2146 = vmatprep.subr.mxu0 0.0
    %v2147 = vand.u32 %v22, 4294901760
    %v2148 = vsub.f32 %v22, %v2147
    %v2149 = vand.u32 %v2148, 4294901760
    %v2150 = vsub.f32 %v2148, %v2149
    %v2151 = vand.u32 %v2150, 4294901760
    %2152 = vmatpush1.msra.mxu0 %v2151
    %2153 = vmatprep.subr.mxu0 0.0
    %v2154 = vand.u32 %v23, 4294901760
    %v2155 = vsub.f32 %v23, %v2154
    %v2156 = vand.u32 %v2155, 4294901760
    %v2157 = vsub.f32 %v2155, %v2156
    %v2158 = vand.u32 %v2157, 4294901760
    %2159 = vmatpush1.msra.mxu0 %v2158
    %2160 = vmatprep.subr.mxu0 0.0
    %v2161 = vand.u32 %v24, 4294901760
    %v2162 = vsub.f32 %v24, %v2161
    %v2163 = vand.u32 %v2162, 4294901760
    %v2164 = vsub.f32 %v2162, %v2163
    %v2165 = vand.u32 %v2164, 4294901760
    %2166 = vmatpush1.msra.mxu0 %v2165
    %2167 = vmatprep.subr.mxu0 0.0
    %v2168 = vand.u32 %v25, 4294901760
    %v2169 = vsub.f32 %v25, %v2168
    %v2170 = vand.u32 %v2169, 4294901760
    %v2171 = vsub.f32 %v2169, %v2170
    %v2172 = vand.u32 %v2171, 4294901760
    %2173 = vmatpush1.msra.mxu0 %v2172
    %2174 = vmatprep.subr.mxu0 0.0
    %v2175 = vand.u32 %v26, 4294901760
    %v2176 = vsub.f32 %v26, %v2175
    %v2177 = vand.u32 %v2176, 4294901760
    %v2178 = vsub.f32 %v2176, %v2177
    %v2179 = vand.u32 %v2178, 4294901760
    %2180 = vmatpush1.msra.mxu0 %v2179
    %2181 = vmatprep.subr.mxu0 0.0
    %v2182 = vand.u32 %v27, 4294901760
    %v2183 = vsub.f32 %v27, %v2182
    %v2184 = vand.u32 %v2183, 4294901760
    %v2185 = vsub.f32 %v2183, %v2184
    %v2186 = vand.u32 %v2185, 4294901760
    %2187 = vmatpush1.msra.mxu0 %v2186
    %2188 = vmatprep.subr.mxu0 0.0
    %v2189 = vand.u32 %v28, 4294901760
    %v2190 = vsub.f32 %v28, %v2189
    %v2191 = vand.u32 %v2190, 4294901760
    %v2192 = vsub.f32 %v2190, %v2191
    %v2193 = vand.u32 %v2192, 4294901760
    %2194 = vmatpush1.msra.mxu0 %v2193
    %2195 = vmatprep.subr.mxu0 0.0
    %2196 = vmatpush1.msra.mxu0 0.0
    %2197 = vmatprep.subr.mxu0 0.0
    %2198 = vmatpush1.msra.mxu0 0.0
    %2199 = vmatprep.subr.mxu0 0.0
    %2200 = vmatpush1.msra.mxu0 0.0
    %2201 = vmatprep.subr.mxu0 0.0
    %2202 = vmatpush1.msra.mxu0 0.0
    %2203 = vmatprep.subr.mxu0 0.0
    %2204 = vmatpush1.msra.mxu0 0.0
    %2205 = vmatprep.subr.mxu0 0.0
    %2206 = vmatpush1.msra.mxu0 0.0
    %2207 = vmatprep.subr.mxu0 0.0
    %2208 = vmatpush1.msra.mxu0 0.0
    %2209 = vmatprep.subr.mxu0 0.0
    %2210 = vmatpush1.msra.mxu0 0.0
    %2211 = vmatprep.subr.mxu0 0.0
    %2212 = vmatpush1.msra.mxu0 0.0
    %2213 = vmatprep.subr.mxu0 0.0
    %2214 = vmatpush1.msra.mxu0 0.0
    %2215 = vmatprep.subr.mxu0 0.0
    %2216 = vmatpush1.msra.mxu0 0.0
    %2217 = vmatprep.subr.mxu0 0.0
    %2218 = vmatpush1.msra.mxu0 0.0
    %2219 = vmatprep.subr.mxu0 0.0
    %2220 = vmatpush1.msra.mxu0 0.0
    %2221 = vmatprep.subr.mxu0 0.0
    %2222 = vmatpush1.msra.mxu0 0.0
    %2223 = vmatprep.subr.mxu0 0.0
    %2224 = vmatpush1.msra.mxu0 0.0
    %2225 = vmatprep.subr.mxu0 0.0
    %2226 = vmatpush1.msra.mxu0 0.0
    %2227 = vmatprep.mubr.f32.mxu0 0.0
    %v2228 = vand.u32 %v1991, 4294901760
    %2229 = vmatmul.mubr.f32.gmra.mrb[0].mxu0 %v2228
    %v2230 = vpop.f32.mrb[0].mxu0
    %v2231 = vadd.f32 %v2080, %v2230
    %v2232 = vpop.f32.mrb[0].mxu0
    %2233 = vdwg.mxu0
    %2234 = vmatprep.subr.mxu0 0.0
    %v2235 = vand.u32 %v13, 4294901760
    %v2236 = vsub.f32 %v13, %v2235
    %2237 = vmatpush1.msra.mxu0 %v2236
    %2238 = vmatprep.subr.mxu0 0.0
    %v2239 = vand.u32 %v14, 4294901760
    %v2240 = vsub.f32 %v14, %v2239
    %2241 = vmatpush1.msra.mxu0 %v2240
    %2242 = vmatprep.subr.mxu0 0.0
    %v2243 = vand.u32 %v15, 4294901760
    %v2244 = vsub.f32 %v15, %v2243
    %2245 = vmatpush1.msra.mxu0 %v2244
    %2246 = vmatprep.subr.mxu0 0.0
    %v2247 = vand.u32 %v16, 4294901760
    %v2248 = vsub.f32 %v16, %v2247
    %2249 = vmatpush1.msra.mxu0 %v2248
    %2250 = vmatprep.subr.mxu0 0.0
    %v2251 = vand.u32 %v17, 4294901760
    %v2252 = vsub.f32 %v17, %v2251
    %2253 = vmatpush1.msra.mxu0 %v2252
    %2254 = vmatprep.subr.mxu0 0.0
    %v2255 = vand.u32 %v18, 4294901760
    %v2256 = vsub.f32 %v18, %v2255
    %2257 = vmatpush1.msra.mxu0 %v2256
    %2258 = vmatprep.subr.mxu0 0.0
    %v2259 = vand.u32 %v19, 4294901760
    %v2260 = vsub.f32 %v19, %v2259
    %2261 = vmatpush1.msra.mxu0 %v2260
    %2262 = vmatprep.subr.mxu0 0.0
    %v2263 = vand.u32 %v20, 4294901760
    %v2264 = vsub.f32 %v20, %v2263
    %2265 = vmatpush1.msra.mxu0 %v2264
    %2266 = vmatprep.subr.mxu0 0.0
    %v2267 = vand.u32 %v21, 4294901760
    %v2268 = vsub.f32 %v21, %v2267
    %2269 = vmatpush1.msra.mxu0 %v2268
    %2270 = vmatprep.subr.mxu0 0.0
    %v2271 = vand.u32 %v22, 4294901760
    %v2272 = vsub.f32 %v22, %v2271
    %2273 = vmatpush1.msra.mxu0 %v2272
    %2274 = vmatprep.subr.mxu0 0.0
    %v2275 = vand.u32 %v23, 4294901760
    %v2276 = vsub.f32 %v23, %v2275
    %2277 = vmatpush1.msra.mxu0 %v2276
    %2278 = vmatprep.subr.mxu0 0.0
    %v2279 = vand.u32 %v24, 4294901760
    %v2280 = vsub.f32 %v24, %v2279
    %2281 = vmatpush1.msra.mxu0 %v2280
    %2282 = vmatprep.subr.mxu0 0.0
    %v2283 = vand.u32 %v25, 4294901760
    %v2284 = vsub.f32 %v25, %v2283
    %2285 = vmatpush1.msra.mxu0 %v2284
    %2286 = vmatprep.subr.mxu0 0.0
    %v2287 = vand.u32 %v26, 4294901760
    %v2288 = vsub.f32 %v26, %v2287
    %2289 = vmatpush1.msra.mxu0 %v2288
    %2290 = vmatprep.subr.mxu0 0.0
    %v2291 = vand.u32 %v27, 4294901760
    %v2292 = vsub.f32 %v27, %v2291
    %2293 = vmatpush1.msra.mxu0 %v2292
    %2294 = vmatprep.subr.mxu0 0.0
    %v2295 = vand.u32 %v28, 4294901760
    %v2296 = vsub.f32 %v28, %v2295
    %2297 = vmatpush1.msra.mxu0 %v2296
    %2298 = vmatprep.subr.mxu0 0.0
    %2299 = vmatpush1.msra.mxu0 0.0
    %2300 = vmatprep.subr.mxu0 0.0
    %2301 = vmatpush1.msra.mxu0 0.0
    %2302 = vmatprep.subr.mxu0 0.0
    %2303 = vmatpush1.msra.mxu0 0.0
    %2304 = vmatprep.subr.mxu0 0.0
    %2305 = vmatpush1.msra.mxu0 0.0
    %2306 = vmatprep.subr.mxu0 0.0
    %2307 = vmatpush1.msra.mxu0 0.0
    %2308 = vmatprep.subr.mxu0 0.0
    %2309 = vmatpush1.msra.mxu0 0.0
    %2310 = vmatprep.subr.mxu0 0.0
    %2311 = vmatpush1.msra.mxu0 0.0
    %2312 = vmatprep.subr.mxu0 0.0
    %2313 = vmatpush1.msra.mxu0 0.0
    %2314 = vmatprep.subr.mxu0 0.0
    %2315 = vmatpush1.msra.mxu0 0.0
    %2316 = vmatprep.subr.mxu0 0.0
    %2317 = vmatpush1.msra.mxu0 0.0
    %2318 = vmatprep.subr.mxu0 0.0
    %2319 = vmatpush1.msra.mxu0 0.0
    %2320 = vmatprep.subr.mxu0 0.0
    %2321 = vmatpush1.msra.mxu0 0.0
    %2322 = vmatprep.subr.mxu0 0.0
    %2323 = vmatpush1.msra.mxu0 0.0
    %2324 = vmatprep.subr.mxu0 0.0
    %2325 = vmatpush1.msra.mxu0 0.0
    %2326 = vmatprep.subr.mxu0 0.0
    %2327 = vmatpush1.msra.mxu0 0.0
    %2328 = vmatprep.subr.mxu0 0.0
    %2329 = vmatpush1.msra.mxu0 0.0
    %2330 = vmatprep.mubr.f32.mxu0 0.0
    %v2331 = vand.u32 %v1991, 4294901760
    %v2332 = vsub.f32 %v1991, %v2331
    %2333 = vmatmul.mubr.f32.gmra.mrb[0].mxu0 %v2332
    %v2334 = vpop.f32.mrb[0].mxu0
    %v2335 = vadd.f32 %v2231, %v2334
    %v2336 = vpop.f32.mrb[0].mxu0
    %2337 = vdwg.mxu0
    %2338 = vmatprep.subr.mxu0 0.0
    %v2339 = vand.u32 %v13, 4294901760
    %2340 = vmatpush1.msra.mxu0 %v2339
    %2341 = vmatprep.subr.mxu0 0.0
    %v2342 = vand.u32 %v14, 4294901760
    %2343 = vmatpush1.msra.mxu0 %v2342
    %2344 = vmatprep.subr.mxu0 0.0
    %v2345 = vand.u32 %v15, 4294901760
    %2346 = vmatpush1.msra.mxu0 %v2345
    %2347 = vmatprep.subr.mxu0 0.0
    %v2348 = vand.u32 %v16, 4294901760
    %2349 = vmatpush1.msra.mxu0 %v2348
    %2350 = vmatprep.subr.mxu0 0.0
    %v2351 = vand.u32 %v17, 4294901760
    %2352 = vmatpush1.msra.mxu0 %v2351
    %2353 = vmatprep.subr.mxu0 0.0
    %v2354 = vand.u32 %v18, 4294901760
    %2355 = vmatpush1.msra.mxu0 %v2354
    %2356 = vmatprep.subr.mxu0 0.0
    %v2357 = vand.u32 %v19, 4294901760
    %2358 = vmatpush1.msra.mxu0 %v2357
    %2359 = vmatprep.subr.mxu0 0.0
    %v2360 = vand.u32 %v20, 4294901760
    %2361 = vmatpush1.msra.mxu0 %v2360
    %2362 = vmatprep.subr.mxu0 0.0
    %v2363 = vand.u32 %v21, 4294901760
    %2364 = vmatpush1.msra.mxu0 %v2363
    %2365 = vmatprep.subr.mxu0 0.0
    %v2366 = vand.u32 %v22, 4294901760
    %2367 = vmatpush1.msra.mxu0 %v2366
    %2368 = vmatprep.subr.mxu0 0.0
    %v2369 = vand.u32 %v23, 4294901760
    %2370 = vmatpush1.msra.mxu0 %v2369
    %2371 = vmatprep.subr.mxu0 0.0
    %v2372 = vand.u32 %v24, 4294901760
    %2373 = vmatpush1.msra.mxu0 %v2372
    %2374 = vmatprep.subr.mxu0 0.0
    %v2375 = vand.u32 %v25, 4294901760
    %2376 = vmatpush1.msra.mxu0 %v2375
    %2377 = vmatprep.subr.mxu0 0.0
    %v2378 = vand.u32 %v26, 4294901760
    %2379 = vmatpush1.msra.mxu0 %v2378
    %2380 = vmatprep.subr.mxu0 0.0
    %v2381 = vand.u32 %v27, 4294901760
    %2382 = vmatpush1.msra.mxu0 %v2381
    %2383 = vmatprep.subr.mxu0 0.0
    %v2384 = vand.u32 %v28, 4294901760
    %2385 = vmatpush1.msra.mxu0 %v2384
    %2386 = vmatprep.subr.mxu0 0.0
    %2387 = vmatpush1.msra.mxu0 0.0
    %2388 = vmatprep.subr.mxu0 0.0
    %2389 = vmatpush1.msra.mxu0 0.0
    %2390 = vmatprep.subr.mxu0 0.0
    %2391 = vmatpush1.msra.mxu0 0.0
    %2392 = vmatprep.subr.mxu0 0.0
    %2393 = vmatpush1.msra.mxu0 0.0
    %2394 = vmatprep.subr.mxu0 0.0
    %2395 = vmatpush1.msra.mxu0 0.0
    %2396 = vmatprep.subr.mxu0 0.0
    %2397 = vmatpush1.msra.mxu0 0.0
    %2398 = vmatprep.subr.mxu0 0.0
    %2399 = vmatpush1.msra.mxu0 0.0
    %2400 = vmatprep.subr.mxu0 0.0
    %2401 = vmatpush1.msra.mxu0 0.0
    %2402 = vmatprep.subr.mxu0 0.0
    %2403 = vmatpush1.msra.mxu0 0.0
    %2404 = vmatprep.subr.mxu0 0.0
    %2405 = vmatpush1.msra.mxu0 0.0
    %2406 = vmatprep.subr.mxu0 0.0
    %2407 = vmatpush1.msra.mxu0 0.0
    %2408 = vmatprep.subr.mxu0 0.0
    %2409 = vmatpush1.msra.mxu0 0.0
    %2410 = vmatprep.subr.mxu0 0.0
    %2411 = vmatpush1.msra.mxu0 0.0
    %2412 = vmatprep.subr.mxu0 0.0
    %2413 = vmatpush1.msra.mxu0 0.0
    %2414 = vmatprep.subr.mxu0 0.0
    %2415 = vmatpush1.msra.mxu0 0.0
    %2416 = vmatprep.subr.mxu0 0.0
    %2417 = vmatpush1.msra.mxu0 0.0
    %2418 = vmatprep.mubr.f32.mxu0 0.0
    %v2419 = vand.u32 %v1991, 4294901760
    %v2420 = vsub.f32 %v1991, %v2419
    %v2421 = vand.u32 %v2420, 4294901760
    %2422 = vmatmul.mubr.f32.gmra.mrb[0].mxu0 %v2421
    %v2423 = vpop.f32.mrb[0].mxu0
    %v2424 = vadd.f32 %v2335, %v2423
    %v2425 = vpop.f32.mrb[0].mxu0
    %2426 = vdwg.mxu0
    %2427 = vmatprep.subr.mxu0 0.0
    %v2428 = vand.u32 %v13, 4294901760
    %v2429 = vsub.f32 %v13, %v2428
    %v2430 = vand.u32 %v2429, 4294901760
    %2431 = vmatpush1.msra.mxu0 %v2430
    %2432 = vmatprep.subr.mxu0 0.0
    %v2433 = vand.u32 %v14, 4294901760
    %v2434 = vsub.f32 %v14, %v2433
    %v2435 = vand.u32 %v2434, 4294901760
    %2436 = vmatpush1.msra.mxu0 %v2435
    %2437 = vmatprep.subr.mxu0 0.0
    %v2438 = vand.u32 %v15, 4294901760
    %v2439 = vsub.f32 %v15, %v2438
    %v2440 = vand.u32 %v2439, 4294901760
    %2441 = vmatpush1.msra.mxu0 %v2440
    %2442 = vmatprep.subr.mxu0 0.0
    %v2443 = vand.u32 %v16, 4294901760
    %v2444 = vsub.f32 %v16, %v2443
    %v2445 = vand.u32 %v2444, 4294901760
    %2446 = vmatpush1.msra.mxu0 %v2445
    %2447 = vmatprep.subr.mxu0 0.0
    %v2448 = vand.u32 %v17, 4294901760
    %v2449 = vsub.f32 %v17, %v2448
    %v2450 = vand.u32 %v2449, 4294901760
    %2451 = vmatpush1.msra.mxu0 %v2450
    %2452 = vmatprep.subr.mxu0 0.0
    %v2453 = vand.u32 %v18, 4294901760
    %v2454 = vsub.f32 %v18, %v2453
    %v2455 = vand.u32 %v2454, 4294901760
    %2456 = vmatpush1.msra.mxu0 %v2455
    %2457 = vmatprep.subr.mxu0 0.0
    %v2458 = vand.u32 %v19, 4294901760
    %v2459 = vsub.f32 %v19, %v2458
    %v2460 = vand.u32 %v2459, 4294901760
    %2461 = vmatpush1.msra.mxu0 %v2460
    %2462 = vmatprep.subr.mxu0 0.0
    %v2463 = vand.u32 %v20, 4294901760
    %v2464 = vsub.f32 %v20, %v2463
    %v2465 = vand.u32 %v2464, 4294901760
    %2466 = vmatpush1.msra.mxu0 %v2465
    %2467 = vmatprep.subr.mxu0 0.0
    %v2468 = vand.u32 %v21, 4294901760
    %v2469 = vsub.f32 %v21, %v2468
    %v2470 = vand.u32 %v2469, 4294901760
    %2471 = vmatpush1.msra.mxu0 %v2470
    %2472 = vmatprep.subr.mxu0 0.0
    %v2473 = vand.u32 %v22, 4294901760
    %v2474 = vsub.f32 %v22, %v2473
    %v2475 = vand.u32 %v2474, 4294901760
    %2476 = vmatpush1.msra.mxu0 %v2475
    %2477 = vmatprep.subr.mxu0 0.0
    %v2478 = vand.u32 %v23, 4294901760
    %v2479 = vsub.f32 %v23, %v2478
    %v2480 = vand.u32 %v2479, 4294901760
    %2481 = vmatpush1.msra.mxu0 %v2480
    %2482 = vmatprep.subr.mxu0 0.0
    %v2483 = vand.u32 %v24, 4294901760
    %v2484 = vsub.f32 %v24, %v2483
    %v2485 = vand.u32 %v2484, 4294901760
    %2486 = vmatpush1.msra.mxu0 %v2485
    %2487 = vmatprep.subr.mxu0 0.0
    %v2488 = vand.u32 %v25, 4294901760
    %v2489 = vsub.f32 %v25, %v2488
    %v2490 = vand.u32 %v2489, 4294901760
    %2491 = vmatpush1.msra.mxu0 %v2490
    %2492 = vmatprep.subr.mxu0 0.0
    %v2493 = vand.u32 %v26, 4294901760
    %v2494 = vsub.f32 %v26, %v2493
    %v2495 = vand.u32 %v2494, 4294901760
    %2496 = vmatpush1.msra.mxu0 %v2495
    %2497 = vmatprep.subr.mxu0 0.0
    %v2498 = vand.u32 %v27, 4294901760
    %v2499 = vsub.f32 %v27, %v2498
    %v2500 = vand.u32 %v2499, 4294901760
    %2501 = vmatpush1.msra.mxu0 %v2500
    %2502 = vmatprep.subr.mxu0 0.0
    %v2503 = vand.u32 %v28, 4294901760
    %v2504 = vsub.f32 %v28, %v2503
    %v2505 = vand.u32 %v2504, 4294901760
    %2506 = vmatpush1.msra.mxu0 %v2505
    %2507 = vmatprep.subr.mxu0 0.0
    %2508 = vmatpush1.msra.mxu0 0.0
    %2509 = vmatprep.subr.mxu0 0.0
    %2510 = vmatpush1.msra.mxu0 0.0
    %2511 = vmatprep.subr.mxu0 0.0
    %2512 = vmatpush1.msra.mxu0 0.0
    %2513 = vmatprep.subr.mxu0 0.0
    %2514 = vmatpush1.msra.mxu0 0.0
    %2515 = vmatprep.subr.mxu0 0.0
    %2516 = vmatpush1.msra.mxu0 0.0
    %2517 = vmatprep.subr.mxu0 0.0
    %2518 = vmatpush1.msra.mxu0 0.0
    %2519 = vmatprep.subr.mxu0 0.0
    %2520 = vmatpush1.msra.mxu0 0.0
    %2521 = vmatprep.subr.mxu0 0.0
    %2522 = vmatpush1.msra.mxu0 0.0
    %2523 = vmatprep.subr.mxu0 0.0
    %2524 = vmatpush1.msra.mxu0 0.0
    %2525 = vmatprep.subr.mxu0 0.0
    %2526 = vmatpush1.msra.mxu0 0.0
    %2527 = vmatprep.subr.mxu0 0.0
    %2528 = vmatpush1.msra.mxu0 0.0
    %2529 = vmatprep.subr.mxu0 0.0
    %2530 = vmatpush1.msra.mxu0 0.0
    %2531 = vmatprep.subr.mxu0 0.0
    %2532 = vmatpush1.msra.mxu0 0.0
    %2533 = vmatprep.subr.mxu0 0.0
    %2534 = vmatpush1.msra.mxu0 0.0
    %2535 = vmatprep.subr.mxu0 0.0
    %2536 = vmatpush1.msra.mxu0 0.0
    %2537 = vmatprep.subr.mxu0 0.0
    %2538 = vmatpush1.msra.mxu0 0.0
    %2539 = vmatprep.mubr.f32.mxu0 0.0
    %v2540 = vand.u32 %v1991, 4294901760
    %2541 = vmatmul.mubr.f32.gmra.mrb[0].mxu0 %v2540
    %v2542 = vpop.f32.mrb[0].mxu0
    %v2543 = vadd.f32 %v2424, %v2542
    %v2544 = vpop.f32.mrb[0].mxu0
    %2545 = vdwg.mxu0
    %2546 = vmatprep.subr.mxu0 0.0
    %v2547 = vand.u32 %v13, 4294901760
    %2548 = vmatpush1.msra.mxu0 %v2547
    %2549 = vmatprep.subr.mxu0 0.0
    %v2550 = vand.u32 %v14, 4294901760
    %2551 = vmatpush1.msra.mxu0 %v2550
    %2552 = vmatprep.subr.mxu0 0.0
    %v2553 = vand.u32 %v15, 4294901760
    %2554 = vmatpush1.msra.mxu0 %v2553
    %2555 = vmatprep.subr.mxu0 0.0
    %v2556 = vand.u32 %v16, 4294901760
    %2557 = vmatpush1.msra.mxu0 %v2556
    %2558 = vmatprep.subr.mxu0 0.0
    %v2559 = vand.u32 %v17, 4294901760
    %2560 = vmatpush1.msra.mxu0 %v2559
    %2561 = vmatprep.subr.mxu0 0.0
    %v2562 = vand.u32 %v18, 4294901760
    %2563 = vmatpush1.msra.mxu0 %v2562
    %2564 = vmatprep.subr.mxu0 0.0
    %v2565 = vand.u32 %v19, 4294901760
    %2566 = vmatpush1.msra.mxu0 %v2565
    %2567 = vmatprep.subr.mxu0 0.0
    %v2568 = vand.u32 %v20, 4294901760
    %2569 = vmatpush1.msra.mxu0 %v2568
    %2570 = vmatprep.subr.mxu0 0.0
    %v2571 = vand.u32 %v21, 4294901760
    %2572 = vmatpush1.msra.mxu0 %v2571
    %2573 = vmatprep.subr.mxu0 0.0
    %v2574 = vand.u32 %v22, 4294901760
    %2575 = vmatpush1.msra.mxu0 %v2574
    %2576 = vmatprep.subr.mxu0 0.0
    %v2577 = vand.u32 %v23, 4294901760
    %2578 = vmatpush1.msra.mxu0 %v2577
    %2579 = vmatprep.subr.mxu0 0.0
    %v2580 = vand.u32 %v24, 4294901760
    %2581 = vmatpush1.msra.mxu0 %v2580
    %2582 = vmatprep.subr.mxu0 0.0
    %v2583 = vand.u32 %v25, 4294901760
    %2584 = vmatpush1.msra.mxu0 %v2583
    %2585 = vmatprep.subr.mxu0 0.0
    %v2586 = vand.u32 %v26, 4294901760
    %2587 = vmatpush1.msra.mxu0 %v2586
    %2588 = vmatprep.subr.mxu0 0.0
    %v2589 = vand.u32 %v27, 4294901760
    %2590 = vmatpush1.msra.mxu0 %v2589
    %2591 = vmatprep.subr.mxu0 0.0
    %v2592 = vand.u32 %v28, 4294901760
    %2593 = vmatpush1.msra.mxu0 %v2592
    %2594 = vmatprep.subr.mxu0 0.0
    %2595 = vmatpush1.msra.mxu0 0.0
    %2596 = vmatprep.subr.mxu0 0.0
    %2597 = vmatpush1.msra.mxu0 0.0
    %2598 = vmatprep.subr.mxu0 0.0
    %2599 = vmatpush1.msra.mxu0 0.0
    %2600 = vmatprep.subr.mxu0 0.0
    %2601 = vmatpush1.msra.mxu0 0.0
    %2602 = vmatprep.subr.mxu0 0.0
    %2603 = vmatpush1.msra.mxu0 0.0
    %2604 = vmatprep.subr.mxu0 0.0
    %2605 = vmatpush1.msra.mxu0 0.0
    %2606 = vmatprep.subr.mxu0 0.0
    %2607 = vmatpush1.msra.mxu0 0.0
    %2608 = vmatprep.subr.mxu0 0.0
    %2609 = vmatpush1.msra.mxu0 0.0
    %2610 = vmatprep.subr.mxu0 0.0
    %2611 = vmatpush1.msra.mxu0 0.0
    %2612 = vmatprep.subr.mxu0 0.0
    %2613 = vmatpush1.msra.mxu0 0.0
    %2614 = vmatprep.subr.mxu0 0.0
    %2615 = vmatpush1.msra.mxu0 0.0
    %2616 = vmatprep.subr.mxu0 0.0
    %2617 = vmatpush1.msra.mxu0 0.0
    %2618 = vmatprep.subr.mxu0 0.0
    %2619 = vmatpush1.msra.mxu0 0.0
    %2620 = vmatprep.subr.mxu0 0.0
    %2621 = vmatpush1.msra.mxu0 0.0
    %2622 = vmatprep.subr.mxu0 0.0
    %2623 = vmatpush1.msra.mxu0 0.0
    %2624 = vmatprep.subr.mxu0 0.0
    %2625 = vmatpush1.msra.mxu0 0.0
    %2626 = vmatprep.mubr.f32.mxu0 0.0
    %v2627 = vand.u32 %v1991, 4294901760
    %2628 = vmatmul.mubr.f32.gmra.mrb[0].mxu0 %v2627
    %v2629 = vpop.f32.mrb[0].mxu0
    %v2630 = vadd.f32 %v2543, %v2629
    %v2631 = vpop.f32.mrb[0].mxu0
    %2632 = vdwg.mxu0
    %2634 = vrot.lane.b32.xlu0 %v2630, 96
    %v2635 = vpop.permute.xlu0 %2634
    %vm2637 = vcmask 1048320
    %2638 = vst.msk [vmem:[#allocation2] sm:$0xff] %vm2637, %v2635
    // Predicated region
    $region10: #{tpu_custom_call.1} parent=1 // pred_check
      _
    $region11: #{tpu_custom_call.1} parent=1 // pred_check_branch
      %2640 = sbr.rel (0) target = $region13
    $region12: #{tpu_custom_call.1} parent=1 // pred_region
      %s2642 = ssub.s32 128, 128
      %2643 = vsyncadd [#allocation3], %s2642
      %s2645 = sshll.u32 [#allocation2], 4
      %s2646 = int_to_ptr.vmem [resolvable:$true] %s2645
      %2648 = dma.vmem_to_hbm [thread:$0]  %s2646, 128, %s2, [#allocation3]
    $region13: #{tpu_custom_call.1} parent=1 // pred_fallthru
      _
    // Predicated region
    $region14: #{tpu_custom_call.1} parent=1 // pred_check
      _
    $region15: #{tpu_custom_call.1} parent=1 // pred_check_branch
      %2650 = sbr.rel (0) target = $region17
    $region16: #{tpu_custom_call.1} parent=1 // pred_region
      %2651 = dma.done [#allocation3], 128
    $region17: #{tpu_custom_call.1} parent=1 // pred_fallthru
      _
    %2652 = vsyncpa [#allocation3], 1

</llo_original>
